<compile_context>
chip_gen: v6e
topology: v6e:2x2x1
jax: 0.10.0
libtpu: 0.0.40
codegen_flags: <defaults>
</compile_context>

<pallas_src>
import functools

import jax
import jax.numpy as jnp
from jax import lax
from jax.experimental import pallas as pl
from jax.experimental.pallas import tpu as pltpu


# ---------------------------------------------------------------------------
# Fused Pallas kernel: zipped embedded input -> 2-layer bi-RNN -> linear head
# ---------------------------------------------------------------------------

def _fused_birnn_kernel(
    x_ref,       # (S, BT, 2E) f32  direction-zipped time-major input block
    w_ih0_ref,   # (2E, 2H)    bf16 block_diag(W_ih_l0_fwd.T, W_ih_l0_rev.T)
    w_hh0_ref,   # (2H, 2H)    bf16 block_diag(W_hh_l0_fwd.T, W_hh_l0_rev.T)
    b0_ref,      # (1, 2H)     f32  [b_ih+b_hh fwd | b_ih+b_hh rev]
    w1a_ref,     # (2H, 2H)    bf16 layer-1 input weight acting on out_a (step order)
    w1b_ref,     # (2H, 2H)    bf16 layer-1 input weight acting on out_b (flipped order)
    w_hh1_ref,   # (2H, 2H)    bf16
    b1_ref,      # (1, 2H)     f32
    w_out_ref,   # (4H, O_pad) bf16 head weight, lane-padded to 128
    b_out_ref,   # (1, O_pad)  f32
    logits_ref,  # (BT, O_pad) f32  output block (lane-dense)
    xw_scr,      # (S, BT, 2H) f32  zipped input projections (+ bias)
    out_a_scr,   # (S, BT, 2H) f32  layer-0 states, step order:  [f0(s)     | r0(S-1-s)]
    out_b_scr,   # (S, BT, 2H) f32  layer-0 states, flipped:     [f0(S-1-s) | r0(s)]
    *, seq, hidden,
):
    S, H = seq, hidden
    H2 = 2 * H
    BT = x_ref.shape[1]
    E2 = x_ref.shape[2]
    bf16, f32 = jnp.bfloat16, jnp.float32

    # Fully unroll short recurrences so LLO can overlap the next step's xw load
    # and the bf16 cast with the current step's MXU dot + tanh.
    unroll = True if S <= 16 else 8

    def run_layer(w_hh_bf, store_outputs):
        """Fused fwd+rev recurrence over xw_scr; returns final [h_fwd | h_rev]."""
        def step(s, h):
            # TODO(synk): if a bundle dump shows Mosaic re-pushing w_hh into the MXU
            # each step, switch to pltpu.matmul_push_rhs / matmul_acc_lhs / matmul_pop.
            pre = xw_scr[s] + jnp.dot(h.astype(bf16), w_hh_bf,
                                      preferred_element_type=f32)
            h = jnp.tanh(pre)
            if store_outputs:
                out_a_scr[s] = h
                out_b_scr[S - 1 - s] = h
            return h

        return lax.fori_loop(0, S, step, jnp.zeros((BT, H2), f32), unroll=unroll)

    # ---- layer 0: one hoisted bf16 MXU projection over the whole sequence ----
    # Input is already direction-zipped, weight is block-diagonal, so the result
    # is the zipped projection directly.
    x2d = x_ref[...].reshape(S * BT, E2).astype(bf16)
    xw0 = jnp.dot(x2d, w_ih0_ref[...], preferred_element_type=f32)
    xw_scr[...] = xw0.reshape(S, BT, H2) + b0_ref[...][None]
    h0_final = run_layer(w_hh0_ref[...], store_outputs=True)            # (BT, 2H)

    # ---- layer 1: zipped projection straight from the two step-order buffers
    # (no flip / concat / where):  xw1_zip[s] = out_a[s] @ w1_a + out_b[s] @ w1_b
    a2d = out_a_scr[...].reshape(S * BT, H2).astype(bf16)
    b2d = out_b_scr[...].reshape(S * BT, H2).astype(bf16)
    xw1 = (jnp.dot(a2d, w1a_ref[...], preferred_element_type=f32)
           + jnp.dot(b2d, w1b_ref[...], preferred_element_type=f32))
    xw_scr[...] = xw1.reshape(S, BT, H2) + b1_ref[...][None]
    h1_final = run_layer(w_hh1_ref[...], store_outputs=False)           # (BT, 2H)

    # ---- linear head on [h0_fwd | h0_rev | h1_fwd | h1_rev]  (4H = 128 lanes) ----
    h_cat = jnp.concatenate([h0_final, h1_final], axis=-1).astype(bf16)
    logits = jnp.dot(h_cat, w_out_ref[...], preferred_element_type=f32)
    logits_ref[...] = (logits + b_out_ref[...]).astype(logits_ref.dtype)


_WEIGHT_NAMES = ("w_ih0", "w_hh0", "b0", "w1_a", "w1_b", "w_hh1", "b1",
                 "w_out", "b_out")


def fused_birnn(x_zip, kp, *, hidden):
    """x_zip: (S, B_pad, 2E) f32 zipped time-major input -> (B_pad, O_pad) logits."""
    S, Bp, E2 = x_zip.shape
    H = hidden
    H2 = 2 * H
    o_pad = kp["w_out"].shape[1]
    assert Bp % 8 == 0, "batch must be padded to a multiple of 8 sublanes"

    # Batch-tile grid: one tile at small batch; multiple "parallel" tiles so both
    # v7x TensorCores get work when the batch is large.
    bt = Bp if Bp <= 128 else 128
    assert Bp % bt == 0
    n_bt = Bp // bt

    kernel = functools.partial(_fused_birnn_kernel, seq=S, hidden=H)

    def replicated(name):
        shp = kp[name].shape
        n = len(shp)
        return pl.BlockSpec(shp, lambda b: (0,) * n)

    grid_spec = pltpu.PrefetchScalarGridSpec(
        num_scalar_prefetch=0,
        grid=(n_bt,),
        in_specs=[pl.BlockSpec((S, bt, E2), lambda b: (0, b, 0))]
                 + [replicated(n) for n in _WEIGHT_NAMES],
        out_specs=pl.BlockSpec((bt, o_pad), lambda b: (b, 0)),
        scratch_shapes=[
            pltpu.VMEM((S, bt, H2), jnp.float32),   # zipped input projections
            pltpu.VMEM((S, bt, H2), jnp.float32),   # layer-0 states, step order
            pltpu.VMEM((S, bt, H2), jnp.float32),   # layer-0 states, flipped order
        ],
    )

    # VMEM budget derived from the actual resident buffers (double-buffered input /
    # output blocks + weights + scratch), capped at v7x's 64 MiB physical VMEM.
    weight_bytes = sum(kp[n].size * kp[n].dtype.itemsize for n in _WEIGHT_NAMES)
    resident = (2 * (S * bt * E2 * 4 + weight_bytes + bt * o_pad * 4)
                + 3 * S * bt * H2 * 4)
    vmem_limit = min(64 * 1024 * 1024, max(4 * 1024 * 1024, int(resident * 1.5)))

    return pl.pallas_call(
        kernel,
        out_shape=jax.ShapeDtypeStruct((Bp, o_pad), jnp.float32),
        grid_spec=grid_spec,
        compiler_params=pltpu.CompilerParams(
            dimension_semantics=("parallel",),
            vmem_limit_bytes=vmem_limit),
    )(x_zip, *(kp[n] for n in _WEIGHT_NAMES))


# ---------------------------------------------------------------------------
# Forward pass (matches the PyTorch module semantics)
# ---------------------------------------------------------------------------

@functools.partial(jax.jit, static_argnames=("hidden", "output_size"))
def rnn_forward(kp, input_sentences, *, hidden, output_size):
    """input_sentences: (batch, seq) int32 token ids -> logits (batch, output_size)."""
    # TODO(synk): embedding gather stays in plain JAX (jnp.take); a Pallas gather is
    # not worthwhile at batch*seq lookups. It gathers directly in time-major AND
    # direction-zipped form: x_zip[s, b] = [emb(tok[b, s]) | emb(tok[b, S-1-s])],
    # so no transpose / reverse / concat passes over the embedded data are needed.
    emb = kp["embedding"]
    tok_tm = input_sentences.T                                  # (S, B) time-major
    S, B = tok_tm.shape
    E = emb.shape[1]
    idx2 = jnp.stack([tok_tm, tok_tm[::-1]], axis=-1)           # (S, B, 2)
    x_zip = jnp.take(emb, idx2, axis=0).reshape(S, B, 2 * E).astype(jnp.float32)

    if B > 128:
        b_pad = ((B + 127) // 128) * 128                        # whole 128-row tiles
    else:
        b_pad = max(8, ((B + 7) // 8) * 8)                      # sublane-dense batch
    if b_pad != B:
        x_zip = jnp.pad(x_zip, ((0, 0), (0, b_pad - B), (0, 0)))

    logits_pad = fused_birnn(x_zip, kp, hidden=hidden)
    return logits_pad[:B, :output_size]


# ---------------------------------------------------------------------------
# Parameters: PyTorch-layout init + packing into the fused kernel layout
# ---------------------------------------------------------------------------

def init_torch_like_params(key, vocab_size, embedding_length, hidden_size, output_size):
    """Deterministic params with exactly the PyTorch module's shapes/orientation."""
    keys = iter(jax.random.split(key, 32))

    def unif(shape, bound):
        return jax.random.uniform(next(keys), shape, jnp.float32, -bound, bound)

    p = {"embedding": jax.random.normal(next(keys), (vocab_size, embedding_length),
                                        jnp.float32)}
    stdv = 1.0 / float(hidden_size) ** 0.5
    for layer, in_size in enumerate([embedding_length, 2 * hidden_size]):
        for sfx in ("", "_reverse"):
            p[f"weight_ih_l{layer}{sfx}"] = unif((hidden_size, in_size), stdv)
            p[f"weight_hh_l{layer}{sfx}"] = unif((hidden_size, hidden_size), stdv)
            p[f"bias_ih_l{layer}{sfx}"] = unif((hidden_size,), stdv)
            p[f"bias_hh_l{layer}{sfx}"] = unif((hidden_size,), stdv)
    bound = 1.0 / float(4 * hidden_size) ** 0.5
    p["label_weight"] = unif((output_size, 4 * hidden_size), bound)
    p["label_bias"] = unif((output_size,), bound)
    return p


def pack_params(tp, *, hidden, embedding_length, output_size, out_lane_pad=128):
    """Fuse fwd/rev weights into the kernel's zipped layout; matmul weights in bf16."""
    H, E = hidden, embedding_length
    H2, E2 = 2 * H, 2 * E
    f32, bf16 = jnp.float32, jnp.bfloat16

    # layer 0: block-diag input weight acting on the zipped input [x(t) | x(S-1-t)].
    w_ih0 = jnp.zeros((E2, H2), f32)
    w_ih0 = w_ih0.at[:E, :H].set(tp["weight_ih_l0"].T)
    w_ih0 = w_ih0.at[E:, H:].set(tp["weight_ih_l0_reverse"].T)

    def fuse_hh(layer):
        w = jnp.zeros((H2, H2), f32)
        w = w.at[:H, :H].set(tp[f"weight_hh_l{layer}"].T)
        w = w.at[H:, H:].set(tp[f"weight_hh_l{layer}_reverse"].T)
        return w

    def fuse_b(layer):
        bf = tp[f"bias_ih_l{layer}"] + tp[f"bias_hh_l{layer}"]
        br = tp[f"bias_ih_l{layer}_reverse"] + tp[f"bias_hh_l{layer}_reverse"]
        return jnp.concatenate([bf, br]).reshape(1, H2).astype(f32)

    # layer 1: zipped projection split across the two step-order state buffers:
    #   xw1_zip[s] = out_a[s] @ w1_a + out_b[s] @ w1_b
    # with out_a[s] = [f0(s) | r0(S-1-s)] and out_b[s] = [f0(S-1-s) | r0(s)].
    W1f = tp["weight_ih_l1"].T              # (2H, H): rows :H act on f0, rows H: on r0
    W1r = tp["weight_ih_l1_reverse"].T
    w1_a = jnp.zeros((H2, H2), f32).at[:H, :H].set(W1f[:H]).at[H:, H:].set(W1r[H:])
    w1_b = jnp.zeros((H2, H2), f32).at[H:, :H].set(W1f[H:]).at[:H, H:].set(W1r[:H])

    o_pad = max(out_lane_pad, output_size)
    w_out = jnp.zeros((4 * H, o_pad), f32).at[:, :output_size].set(
        tp["label_weight"].T)
    b_out = jnp.zeros((1, o_pad), f32).at[0, :output_size].set(tp["label_bias"])

    return {
        "embedding": tp["embedding"].astype(f32),
        "w_ih0": w_ih0.astype(bf16), "w_hh0": fuse_hh(0).astype(bf16), "b0": fuse_b(0),
        "w1_a": w1_a.astype(bf16), "w1_b": w1_b.astype(bf16),
        "w_hh1": fuse_hh(1).astype(bf16), "b1": fuse_b(1),
        "w_out": w_out.astype(bf16), "b_out": b_out,
    }


# ---------------------------------------------------------------------------
# Pure-JAX reference (mirrors the PyTorch forward) for a correctness check
# ---------------------------------------------------------------------------

def _reference_direction(x, w_ih, w_hh, b_ih, b_hh):
    def step(h, x_t):
        h = jnp.tanh(x_t @ w_ih.T + h @ w_hh.T + b_ih + b_hh)
        return h, h
    h0 = jnp.zeros((x.shape[1], w_hh.shape[0]), jnp.float32)
    h_last, outs = lax.scan(step, h0, x)
    return outs, h_last


def reference_forward(tp, input_sentences):
    emb = jnp.take(tp["embedding"], input_sentences, axis=0)
    x = jnp.transpose(emb, (1, 0, 2)).astype(jnp.float32)
    of0, hf0 = _reference_direction(x, tp["weight_ih_l0"], tp["weight_hh_l0"],
                                    tp["bias_ih_l0"], tp["bias_hh_l0"])
    orr, hr0 = _reference_direction(x[::-1], tp["weight_ih_l0_reverse"],
                                    tp["weight_hh_l0_reverse"],
                                    tp["bias_ih_l0_reverse"], tp["bias_hh_l0_reverse"])
    x1 = jnp.concatenate([of0, orr[::-1]], axis=-1)
    _, hf1 = _reference_direction(x1, tp["weight_ih_l1"], tp["weight_hh_l1"],
                                  tp["bias_ih_l1"], tp["bias_hh_l1"])
    _, hr1 = _reference_direction(x1[::-1], tp["weight_ih_l1_reverse"],
                                  tp["weight_hh_l1_reverse"],
                                  tp["bias_ih_l1_reverse"], tp["bias_hh_l1_reverse"])
    h_cat = jnp.concatenate([hf0, hr0, hf1, hr1], axis=-1)
    return h_cat @ tp["label_weight"].T + tp["label_bias"]


# ---------------------------------------------------------------------------
# Main
# ---------------------------------------------------------------------------

if __name__ == "__main__":
    batch_size = 2
    seq_len = 8
    vocab_size = 50
    embedding_length = 32
    hidden_size = 32
    output_size = 2

    key = jax.random.PRNGKey(0)
    k_params, k_tokens = jax.random.split(key)

    torch_params = init_torch_like_params(
        k_params, vocab_size, embedding_length, hidden_size, output_size)
    kernel_params = pack_params(torch_params, hidden=hidden_size,
                                embedding_length=embedding_length,
                                output_size=output_size)
    input_sentences = jax.random.randint(
        k_tokens, (batch_size, seq_len), 0, vocab_size, dtype=jnp.int32)

    logits = rnn_forward(kernel_params, input_sentences,
                         hidden=hidden_size, output_size=output_size)
    logits = jax.block_until_ready(logits)
    assert logits.shape == (batch_size, output_size)
    assert logits.dtype == jnp.float32

    # Verify against a pure-JAX (all-f32) replica of the PyTorch forward.
    # The kernel uses bf16 MXU operands with f32 accumulation -> ~1e-2 drift expected.
    ref = jax.block_until_ready(reference_forward(torch_params, input_sentences))
    max_err = float(jnp.max(jnp.abs(logits - ref)))
    assert max_err < 5e-2, f"kernel/reference mismatch: max_err={max_err}"

    print("KERNEL_OK")
</pallas_src>

<mosaic_0001>
module attributes {stable_mosaic.version = 11 : i64} {
  func.func @_fused_birnn_kernel(%arg0: i32, %arg1: memref<8x8x64xf32, #tpu.memory_space<vmem>>, %arg2: memref<64x64xbf16, #tpu.memory_space<vmem>>, %arg3: memref<64x64xbf16, #tpu.memory_space<vmem>>, %arg4: memref<1x64xf32, #tpu.memory_space<vmem>>, %arg5: memref<64x64xbf16, #tpu.memory_space<vmem>>, %arg6: memref<64x64xbf16, #tpu.memory_space<vmem>>, %arg7: memref<64x64xbf16, #tpu.memory_space<vmem>>, %arg8: memref<1x64xf32, #tpu.memory_space<vmem>>, %arg9: memref<128x128xbf16, #tpu.memory_space<vmem>>, %arg10: memref<1x128xf32, #tpu.memory_space<vmem>>, %arg11: memref<8x128xf32, #tpu.memory_space<vmem>>, %arg12: memref<8x8x64xf32, #tpu.memory_space<vmem>>, %arg13: memref<8x8x64xf32, #tpu.memory_space<vmem>>, %arg14: memref<8x8x64xf32, #tpu.memory_space<vmem>>) attributes {dimension_semantics = [#tpu.dimension_semantics<parallel>], iteration_bounds = array<i64: 1>, scalar_prefetch = 0 : i64, scratch_operands = 3 : i64, tpu.core_type = #tpu.core_type<tc>, window_params = [{transform_indices = @transform_0, window_bounds = array<i64: 8, 8, 64>}, {pipeline_mode = #tpu.pipeline_mode<synchronous>, transform_indices = @transform_1, window_bounds = array<i64: 64, 64>}, {pipeline_mode = #tpu.pipeline_mode<synchronous>, transform_indices = @transform_2, window_bounds = array<i64: 64, 64>}, {pipeline_mode = #tpu.pipeline_mode<synchronous>, transform_indices = @transform_3, window_bounds = array<i64: 1, 64>}, {pipeline_mode = #tpu.pipeline_mode<synchronous>, transform_indices = @transform_4, window_bounds = array<i64: 64, 64>}, {pipeline_mode = #tpu.pipeline_mode<synchronous>, transform_indices = @transform_5, window_bounds = array<i64: 64, 64>}, {pipeline_mode = #tpu.pipeline_mode<synchronous>, transform_indices = @transform_6, window_bounds = array<i64: 64, 64>}, {pipeline_mode = #tpu.pipeline_mode<synchronous>, transform_indices = @transform_7, window_bounds = array<i64: 1, 64>}, {pipeline_mode = #tpu.pipeline_mode<synchronous>, transform_indices = @transform_8, window_bounds = array<i64: 128, 128>}, {pipeline_mode = #tpu.pipeline_mode<synchronous>, transform_indices = @transform_9, window_bounds = array<i64: 1, 128>}, {transform_indices = @transform_10, window_bounds = array<i64: 8, 128>}]} {
    %c0 = arith.constant 0 : index
    %c0_0 = arith.constant 0 : index
    %c0_1 = arith.constant 0 : index
    %0 = vector.load %arg1[%c0, %c0_0, %c0_1] : memref<8x8x64xf32, #tpu.memory_space<vmem>>, vector<8x8x64xf32>
    %1 = vector.shape_cast %0 : vector<8x8x64xf32> to vector<64x64xf32>
    %2 = arith.truncf %1 : vector<64x64xf32> to vector<64x64xbf16>
    %c0_2 = arith.constant 0 : index
    %c0_3 = arith.constant 0 : index
    %3 = vector.load %arg2[%c0_2, %c0_3] : memref<64x64xbf16, #tpu.memory_space<vmem>>, vector<64x64xbf16>
    %cst = arith.constant dense<0.000000e+00> : vector<64x64xf32>
    %4 = tpu.matmul %2, %3, %cst {dimension_numbers = #tpu.dot_dimension_numbers<[1], [0], [0], [1], [0, 0, 1, 1], [], []>} : vector<64x64xbf16>, vector<64x64xbf16>, vector<64x64xf32> -> vector<64x64xf32>
    %5 = vector.shape_cast %4 : vector<64x64xf32> to vector<8x8x64xf32>
    %c0_4 = arith.constant 0 : index
    %c0_5 = arith.constant 0 : index
    %6 = vector.load %arg4[%c0_4, %c0_5] : memref<1x64xf32, #tpu.memory_space<vmem>>, vector<1x64xf32>
    %7 = vector.shape_cast %6 : vector<1x64xf32> to vector<1x1x64xf32>
    %8 = vector.broadcast %7 : vector<1x1x64xf32> to vector<8x8x64xf32>
    %9 = arith.addf %5, %8 : vector<8x8x64xf32>
    %c0_6 = arith.constant 0 : index
    %c0_7 = arith.constant 0 : index
    %c0_8 = arith.constant 0 : index
    %10 = vector.load %arg12[%c0_6, %c0_7, %c0_8] : memref<8x8x64xf32, #tpu.memory_space<vmem>>, vector<8x8x64xf32>
    tpu.vector_store %arg12[%c0_6, %c0_7, %c0_8], %9 {strides = array<i32>} : memref<8x8x64xf32, #tpu.memory_space<vmem>>, vector<8x8x64xf32>,
    %c0_9 = arith.constant 0 : index
    %c0_10 = arith.constant 0 : index
    %11 = vector.load %arg3[%c0_9, %c0_10] : memref<64x64xbf16, #tpu.memory_space<vmem>>, vector<64x64xbf16>
    %cst_11 = arith.constant 0.000000e+00 : f32
    %12 = vector.broadcast %cst_11 : f32 to vector<8x64xf32>
    %c0_i32 = arith.constant 0 : i32
    %13 = arith.index_cast %c0_i32 : i32 to index
    %c0_12 = arith.constant 0 : index
    %c0_13 = arith.constant 0 : index
    %14 = vector.load %arg12[%13, %c0_12, %c0_13] : memref<8x8x64xf32, #tpu.memory_space<vmem>>, vector<1x8x64xf32>
    %15 = vector.shape_cast %14 : vector<1x8x64xf32> to vector<8x64xf32>
    %16 = arith.truncf %12 : vector<8x64xf32> to vector<8x64xbf16>
    %cst_14 = arith.constant dense<0.000000e+00> : vector<8x64xf32>
    %17 = tpu.matmul %16, %11, %cst_14 {dimension_numbers = #tpu.dot_dimension_numbers<[1], [0], [0], [1], [0, 0, 1, 1], [], []>} : vector<8x64xbf16>, vector<64x64xbf16>, vector<8x64xf32> -> vector<8x64xf32>
    %18 = arith.addf %15, %17 : vector<8x64xf32>
    %19 = math.tanh %18 : vector<8x64xf32>
    %20 = arith.index_cast %c0_i32 : i32 to index
    %c0_15 = arith.constant 0 : index
    %c0_16 = arith.constant 0 : index
    %21 = vector.load %arg13[%20, %c0_15, %c0_16] : memref<8x8x64xf32, #tpu.memory_space<vmem>>, vector<1x8x64xf32>
    %22 = vector.shape_cast %21 : vector<1x8x64xf32> to vector<8x64xf32>
    %23 = vector.shape_cast %19 : vector<8x64xf32> to vector<1x8x64xf32>
    tpu.vector_store %arg13[%20, %c0_15, %c0_16], %23 {strides = array<i32>} : memref<8x8x64xf32, #tpu.memory_space<vmem>>, vector<1x8x64xf32>,
    %c7_i32 = arith.constant 7 : i32
    %24 = arith.subi %c7_i32, %c0_i32 : i32
    %25 = arith.index_cast %24 : i32 to index
    %c0_17 = arith.constant 0 : index
    %c0_18 = arith.constant 0 : index
    %26 = vector.load %arg14[%25, %c0_17, %c0_18] : memref<8x8x64xf32, #tpu.memory_space<vmem>>, vector<1x8x64xf32>
    %27 = vector.shape_cast %26 : vector<1x8x64xf32> to vector<8x64xf32>
    %28 = vector.shape_cast %19 : vector<8x64xf32> to vector<1x8x64xf32>
    tpu.vector_store %arg14[%25, %c0_17, %c0_18], %28 {strides = array<i32>} : memref<8x8x64xf32, #tpu.memory_space<vmem>>, vector<1x8x64xf32>,
    %c1_i32 = arith.constant 1 : i32
    %29 = arith.index_cast %c1_i32 : i32 to index
    %c0_19 = arith.constant 0 : index
    %c0_20 = arith.constant 0 : index
    %30 = vector.load %arg12[%29, %c0_19, %c0_20] : memref<8x8x64xf32, #tpu.memory_space<vmem>>, vector<1x8x64xf32>
    %31 = vector.shape_cast %30 : vector<1x8x64xf32> to vector<8x64xf32>
    %32 = arith.truncf %19 : vector<8x64xf32> to vector<8x64xbf16>
    %cst_21 = arith.constant dense<0.000000e+00> : vector<8x64xf32>
    %33 = tpu.matmul %32, %11, %cst_21 {dimension_numbers = #tpu.dot_dimension_numbers<[1], [0], [0], [1], [0, 0, 1, 1], [], []>} : vector<8x64xbf16>, vector<64x64xbf16>, vector<8x64xf32> -> vector<8x64xf32>
    %34 = arith.addf %31, %33 : vector<8x64xf32>
    %35 = math.tanh %34 : vector<8x64xf32>
    %36 = arith.index_cast %c1_i32 : i32 to index
    %c0_22 = arith.constant 0 : index
    %c0_23 = arith.constant 0 : index
    %37 = vector.load %arg13[%36, %c0_22, %c0_23] : memref<8x8x64xf32, #tpu.memory_space<vmem>>, vector<1x8x64xf32>
    %38 = vector.shape_cast %37 : vector<1x8x64xf32> to vector<8x64xf32>
    %39 = vector.shape_cast %35 : vector<8x64xf32> to vector<1x8x64xf32>
    tpu.vector_store %arg13[%36, %c0_22, %c0_23], %39 {strides = array<i32>} : memref<8x8x64xf32, #tpu.memory_space<vmem>>, vector<1x8x64xf32>,
    %c7_i32_24 = arith.constant 7 : i32
    %40 = arith.subi %c7_i32_24, %c1_i32 : i32
    %41 = arith.index_cast %40 : i32 to index
    %c0_25 = arith.constant 0 : index
    %c0_26 = arith.constant 0 : index
    %42 = vector.load %arg14[%41, %c0_25, %c0_26] : memref<8x8x64xf32, #tpu.memory_space<vmem>>, vector<1x8x64xf32>
    %43 = vector.shape_cast %42 : vector<1x8x64xf32> to vector<8x64xf32>
    %44 = vector.shape_cast %35 : vector<8x64xf32> to vector<1x8x64xf32>
    tpu.vector_store %arg14[%41, %c0_25, %c0_26], %44 {strides = array<i32>} : memref<8x8x64xf32, #tpu.memory_space<vmem>>, vector<1x8x64xf32>,
    %c2_i32 = arith.constant 2 : i32
    %45 = arith.index_cast %c2_i32 : i32 to index
    %c0_27 = arith.constant 0 : index
    %c0_28 = arith.constant 0 : index
    %46 = vector.load %arg12[%45, %c0_27, %c0_28] : memref<8x8x64xf32, #tpu.memory_space<vmem>>, vector<1x8x64xf32>
    %47 = vector.shape_cast %46 : vector<1x8x64xf32> to vector<8x64xf32>
    %48 = arith.truncf %35 : vector<8x64xf32> to vector<8x64xbf16>
    %cst_29 = arith.constant dense<0.000000e+00> : vector<8x64xf32>
    %49 = tpu.matmul %48, %11, %cst_29 {dimension_numbers = #tpu.dot_dimension_numbers<[1], [0], [0], [1], [0, 0, 1, 1], [], []>} : vector<8x64xbf16>, vector<64x64xbf16>, vector<8x64xf32> -> vector<8x64xf32>
    %50 = arith.addf %47, %49 : vector<8x64xf32>
    %51 = math.tanh %50 : vector<8x64xf32>
    %52 = arith.index_cast %c2_i32 : i32 to index
    %c0_30 = arith.constant 0 : index
    %c0_31 = arith.constant 0 : index
    %53 = vector.load %arg13[%52, %c0_30, %c0_31] : memref<8x8x64xf32, #tpu.memory_space<vmem>>, vector<1x8x64xf32>
    %54 = vector.shape_cast %53 : vector<1x8x64xf32> to vector<8x64xf32>
    %55 = vector.shape_cast %51 : vector<8x64xf32> to vector<1x8x64xf32>
    tpu.vector_store %arg13[%52, %c0_30, %c0_31], %55 {strides = array<i32>} : memref<8x8x64xf32, #tpu.memory_space<vmem>>, vector<1x8x64xf32>,
    %c7_i32_32 = arith.constant 7 : i32
    %56 = arith.subi %c7_i32_32, %c2_i32 : i32
    %57 = arith.index_cast %56 : i32 to index
    %c0_33 = arith.constant 0 : index
    %c0_34 = arith.constant 0 : index
    %58 = vector.load %arg14[%57, %c0_33, %c0_34] : memref<8x8x64xf32, #tpu.memory_space<vmem>>, vector<1x8x64xf32>
    %59 = vector.shape_cast %58 : vector<1x8x64xf32> to vector<8x64xf32>
    %60 = vector.shape_cast %51 : vector<8x64xf32> to vector<1x8x64xf32>
    tpu.vector_store %arg14[%57, %c0_33, %c0_34], %60 {strides = array<i32>} : memref<8x8x64xf32, #tpu.memory_space<vmem>>, vector<1x8x64xf32>,
    %c3_i32 = arith.constant 3 : i32
    %61 = arith.index_cast %c3_i32 : i32 to index
    %c0_35 = arith.constant 0 : index
    %c0_36 = arith.constant 0 : index
    %62 = vector.load %arg12[%61, %c0_35, %c0_36] : memref<8x8x64xf32, #tpu.memory_space<vmem>>, vector<1x8x64xf32>
    %63 = vector.shape_cast %62 : vector<1x8x64xf32> to vector<8x64xf32>
    %64 = arith.truncf %51 : vector<8x64xf32> to vector<8x64xbf16>
    %cst_37 = arith.constant dense<0.000000e+00> : vector<8x64xf32>
    %65 = tpu.matmul %64, %11, %cst_37 {dimension_numbers = #tpu.dot_dimension_numbers<[1], [0], [0], [1], [0, 0, 1, 1], [], []>} : vector<8x64xbf16>, vector<64x64xbf16>, vector<8x64xf32> -> vector<8x64xf32>
    %66 = arith.addf %63, %65 : vector<8x64xf32>
    %67 = math.tanh %66 : vector<8x64xf32>
    %68 = arith.index_cast %c3_i32 : i32 to index
    %c0_38 = arith.constant 0 : index
    %c0_39 = arith.constant 0 : index
    %69 = vector.load %arg13[%68, %c0_38, %c0_39] : memref<8x8x64xf32, #tpu.memory_space<vmem>>, vector<1x8x64xf32>
    %70 = vector.shape_cast %69 : vector<1x8x64xf32> to vector<8x64xf32>
    %71 = vector.shape_cast %67 : vector<8x64xf32> to vector<1x8x64xf32>
    tpu.vector_store %arg13[%68, %c0_38, %c0_39], %71 {strides = array<i32>} : memref<8x8x64xf32, #tpu.memory_space<vmem>>, vector<1x8x64xf32>,
    %c7_i32_40 = arith.constant 7 : i32
    %72 = arith.subi %c7_i32_40, %c3_i32 : i32
    %73 = arith.index_cast %72 : i32 to index
    %c0_41 = arith.constant 0 : index
    %c0_42 = arith.constant 0 : index
    %74 = vector.load %arg14[%73, %c0_41, %c0_42] : memref<8x8x64xf32, #tpu.memory_space<vmem>>, vector<1x8x64xf32>
    %75 = vector.shape_cast %74 : vector<1x8x64xf32> to vector<8x64xf32>
    %76 = vector.shape_cast %67 : vector<8x64xf32> to vector<1x8x64xf32>
    tpu.vector_store %arg14[%73, %c0_41, %c0_42], %76 {strides = array<i32>} : memref<8x8x64xf32, #tpu.memory_space<vmem>>, vector<1x8x64xf32>,
    %c4_i32 = arith.constant 4 : i32
    %77 = arith.index_cast %c4_i32 : i32 to index
    %c0_43 = arith.constant 0 : index
    %c0_44 = arith.constant 0 : index
    %78 = vector.load %arg12[%77, %c0_43, %c0_44] : memref<8x8x64xf32, #tpu.memory_space<vmem>>, vector<1x8x64xf32>
    %79 = vector.shape_cast %78 : vector<1x8x64xf32> to vector<8x64xf32>
    %80 = arith.truncf %67 : vector<8x64xf32> to vector<8x64xbf16>
    %cst_45 = arith.constant dense<0.000000e+00> : vector<8x64xf32>
    %81 = tpu.matmul %80, %11, %cst_45 {dimension_numbers = #tpu.dot_dimension_numbers<[1], [0], [0], [1], [0, 0, 1, 1], [], []>} : vector<8x64xbf16>, vector<64x64xbf16>, vector<8x64xf32> -> vector<8x64xf32>
    %82 = arith.addf %79, %81 : vector<8x64xf32>
    %83 = math.tanh %82 : vector<8x64xf32>
    %84 = arith.index_cast %c4_i32 : i32 to index
    %c0_46 = arith.constant 0 : index
    %c0_47 = arith.constant 0 : index
    %85 = vector.load %arg13[%84, %c0_46, %c0_47] : memref<8x8x64xf32, #tpu.memory_space<vmem>>, vector<1x8x64xf32>
    %86 = vector.shape_cast %85 : vector<1x8x64xf32> to vector<8x64xf32>
    %87 = vector.shape_cast %83 : vector<8x64xf32> to vector<1x8x64xf32>
    tpu.vector_store %arg13[%84, %c0_46, %c0_47], %87 {strides = array<i32>} : memref<8x8x64xf32, #tpu.memory_space<vmem>>, vector<1x8x64xf32>,
    %c7_i32_48 = arith.constant 7 : i32
    %88 = arith.subi %c7_i32_48, %c4_i32 : i32
    %89 = arith.index_cast %88 : i32 to index
    %c0_49 = arith.constant 0 : index
    %c0_50 = arith.constant 0 : index
    %90 = vector.load %arg14[%89, %c0_49, %c0_50] : memref<8x8x64xf32, #tpu.memory_space<vmem>>, vector<1x8x64xf32>
    %91 = vector.shape_cast %90 : vector<1x8x64xf32> to vector<8x64xf32>
    %92 = vector.shape_cast %83 : vector<8x64xf32> to vector<1x8x64xf32>
    tpu.vector_store %arg14[%89, %c0_49, %c0_50], %92 {strides = array<i32>} : memref<8x8x64xf32, #tpu.memory_space<vmem>>, vector<1x8x64xf32>,
    %c5_i32 = arith.constant 5 : i32
    %93 = arith.index_cast %c5_i32 : i32 to index
    %c0_51 = arith.constant 0 : index
    %c0_52 = arith.constant 0 : index
    %94 = vector.load %arg12[%93, %c0_51, %c0_52] : memref<8x8x64xf32, #tpu.memory_space<vmem>>, vector<1x8x64xf32>
    %95 = vector.shape_cast %94 : vector<1x8x64xf32> to vector<8x64xf32>
    %96 = arith.truncf %83 : vector<8x64xf32> to vector<8x64xbf16>
    %cst_53 = arith.constant dense<0.000000e+00> : vector<8x64xf32>
    %97 = tpu.matmul %96, %11, %cst_53 {dimension_numbers = #tpu.dot_dimension_numbers<[1], [0], [0], [1], [0, 0, 1, 1], [], []>} : vector<8x64xbf16>, vector<64x64xbf16>, vector<8x64xf32> -> vector<8x64xf32>
    %98 = arith.addf %95, %97 : vector<8x64xf32>
    %99 = math.tanh %98 : vector<8x64xf32>
    %100 = arith.index_cast %c5_i32 : i32 to index
    %c0_54 = arith.constant 0 : index
    %c0_55 = arith.constant 0 : index
    %101 = vector.load %arg13[%100, %c0_54, %c0_55] : memref<8x8x64xf32, #tpu.memory_space<vmem>>, vector<1x8x64xf32>
    %102 = vector.shape_cast %101 : vector<1x8x64xf32> to vector<8x64xf32>
    %103 = vector.shape_cast %99 : vector<8x64xf32> to vector<1x8x64xf32>
    tpu.vector_store %arg13[%100, %c0_54, %c0_55], %103 {strides = array<i32>} : memref<8x8x64xf32, #tpu.memory_space<vmem>>, vector<1x8x64xf32>,
    %c7_i32_56 = arith.constant 7 : i32
    %104 = arith.subi %c7_i32_56, %c5_i32 : i32
    %105 = arith.index_cast %104 : i32 to index
    %c0_57 = arith.constant 0 : index
    %c0_58 = arith.constant 0 : index
    %106 = vector.load %arg14[%105, %c0_57, %c0_58] : memref<8x8x64xf32, #tpu.memory_space<vmem>>, vector<1x8x64xf32>
    %107 = vector.shape_cast %106 : vector<1x8x64xf32> to vector<8x64xf32>
    %108 = vector.shape_cast %99 : vector<8x64xf32> to vector<1x8x64xf32>
    tpu.vector_store %arg14[%105, %c0_57, %c0_58], %108 {strides = array<i32>} : memref<8x8x64xf32, #tpu.memory_space<vmem>>, vector<1x8x64xf32>,
    %c6_i32 = arith.constant 6 : i32
    %109 = arith.index_cast %c6_i32 : i32 to index
    %c0_59 = arith.constant 0 : index
    %c0_60 = arith.constant 0 : index
    %110 = vector.load %arg12[%109, %c0_59, %c0_60] : memref<8x8x64xf32, #tpu.memory_space<vmem>>, vector<1x8x64xf32>
    %111 = vector.shape_cast %110 : vector<1x8x64xf32> to vector<8x64xf32>
    %112 = arith.truncf %99 : vector<8x64xf32> to vector<8x64xbf16>
    %cst_61 = arith.constant dense<0.000000e+00> : vector<8x64xf32>
    %113 = tpu.matmul %112, %11, %cst_61 {dimension_numbers = #tpu.dot_dimension_numbers<[1], [0], [0], [1], [0, 0, 1, 1], [], []>} : vector<8x64xbf16>, vector<64x64xbf16>, vector<8x64xf32> -> vector<8x64xf32>
    %114 = arith.addf %111, %113 : vector<8x64xf32>
    %115 = math.tanh %114 : vector<8x64xf32>
    %116 = arith.index_cast %c6_i32 : i32 to index
    %c0_62 = arith.constant 0 : index
    %c0_63 = arith.constant 0 : index
    %117 = vector.load %arg13[%116, %c0_62, %c0_63] : memref<8x8x64xf32, #tpu.memory_space<vmem>>, vector<1x8x64xf32>
    %118 = vector.shape_cast %117 : vector<1x8x64xf32> to vector<8x64xf32>
    %119 = vector.shape_cast %115 : vector<8x64xf32> to vector<1x8x64xf32>
    tpu.vector_store %arg13[%116, %c0_62, %c0_63], %119 {strides = array<i32>} : memref<8x8x64xf32, #tpu.memory_space<vmem>>, vector<1x8x64xf32>,
    %c7_i32_64 = arith.constant 7 : i32
    %120 = arith.subi %c7_i32_64, %c6_i32 : i32
    %121 = arith.index_cast %120 : i32 to index
    %c0_65 = arith.constant 0 : index
    %c0_66 = arith.constant 0 : index
    %122 = vector.load %arg14[%121, %c0_65, %c0_66] : memref<8x8x64xf32, #tpu.memory_space<vmem>>, vector<1x8x64xf32>
    %123 = vector.shape_cast %122 : vector<1x8x64xf32> to vector<8x64xf32>
    %124 = vector.shape_cast %115 : vector<8x64xf32> to vector<1x8x64xf32>
    tpu.vector_store %arg14[%121, %c0_65, %c0_66], %124 {strides = array<i32>} : memref<8x8x64xf32, #tpu.memory_space<vmem>>, vector<1x8x64xf32>,
    %c7_i32_67 = arith.constant 7 : i32
    %125 = arith.index_cast %c7_i32_67 : i32 to index
    %c0_68 = arith.constant 0 : index
    %c0_69 = arith.constant 0 : index
    %126 = vector.load %arg12[%125, %c0_68, %c0_69] : memref<8x8x64xf32, #tpu.memory_space<vmem>>, vector<1x8x64xf32>
    %127 = vector.shape_cast %126 : vector<1x8x64xf32> to vector<8x64xf32>
    %128 = arith.truncf %115 : vector<8x64xf32> to vector<8x64xbf16>
    %cst_70 = arith.constant dense<0.000000e+00> : vector<8x64xf32>
    %129 = tpu.matmul %128, %11, %cst_70 {dimension_numbers = #tpu.dot_dimension_numbers<[1], [0], [0], [1], [0, 0, 1, 1], [], []>} : vector<8x64xbf16>, vector<64x64xbf16>, vector<8x64xf32> -> vector<8x64xf32>
    %130 = arith.addf %127, %129 : vector<8x64xf32>
    %131 = math.tanh %130 : vector<8x64xf32>
    %132 = arith.index_cast %c7_i32_67 : i32 to index
    %c0_71 = arith.constant 0 : index
    %c0_72 = arith.constant 0 : index
    %133 = vector.load %arg13[%132, %c0_71, %c0_72] : memref<8x8x64xf32, #tpu.memory_space<vmem>>, vector<1x8x64xf32>
    %134 = vector.shape_cast %133 : vector<1x8x64xf32> to vector<8x64xf32>
    %135 = vector.shape_cast %131 : vector<8x64xf32> to vector<1x8x64xf32>
    tpu.vector_store %arg13[%132, %c0_71, %c0_72], %135 {strides = array<i32>} : memref<8x8x64xf32, #tpu.memory_space<vmem>>, vector<1x8x64xf32>,
    %c7_i32_73 = arith.constant 7 : i32
    %136 = arith.subi %c7_i32_73, %c7_i32_67 : i32
    %137 = arith.index_cast %136 : i32 to index
    %c0_74 = arith.constant 0 : index
    %c0_75 = arith.constant 0 : index
    %138 = vector.load %arg14[%137, %c0_74, %c0_75] : memref<8x8x64xf32, #tpu.memory_space<vmem>>, vector<1x8x64xf32>
    %139 = vector.shape_cast %138 : vector<1x8x64xf32> to vector<8x64xf32>
    %140 = vector.shape_cast %131 : vector<8x64xf32> to vector<1x8x64xf32>
    tpu.vector_store %arg14[%137, %c0_74, %c0_75], %140 {strides = array<i32>} : memref<8x8x64xf32, #tpu.memory_space<vmem>>, vector<1x8x64xf32>,
    %c8_i32 = arith.constant 8 : i32
    %c0_76 = arith.constant 0 : index
    %c0_77 = arith.constant 0 : index
    %c0_78 = arith.constant 0 : index
    %141 = vector.load %arg13[%c0_76, %c0_77, %c0_78] : memref<8x8x64xf32, #tpu.memory_space<vmem>>, vector<8x8x64xf32>
    %142 = vector.shape_cast %141 : vector<8x8x64xf32> to vector<64x64xf32>
    %143 = arith.truncf %142 : vector<64x64xf32> to vector<64x64xbf16>
    %c0_79 = arith.constant 0 : index
    %c0_80 = arith.constant 0 : index
    %c0_81 = arith.constant 0 : index
    %144 = vector.load %arg14[%c0_79, %c0_80, %c0_81] : memref<8x8x64xf32, #tpu.memory_space<vmem>>, vector<8x8x64xf32>
    %145 = vector.shape_cast %144 : vector<8x8x64xf32> to vector<64x64xf32>
    %146 = arith.truncf %145 : vector<64x64xf32> to vector<64x64xbf16>
    %c0_82 = arith.constant 0 : index
    %c0_83 = arith.constant 0 : index
    %147 = vector.load %arg5[%c0_82, %c0_83] : memref<64x64xbf16, #tpu.memory_space<vmem>>, vector<64x64xbf16>
    %cst_84 = arith.constant dense<0.000000e+00> : vector<64x64xf32>
    %148 = tpu.matmul %143, %147, %cst_84 {dimension_numbers = #tpu.dot_dimension_numbers<[1], [0], [0], [1], [0, 0, 1, 1], [], []>} : vector<64x64xbf16>, vector<64x64xbf16>, vector<64x64xf32> -> vector<64x64xf32>
    %c0_85 = arith.constant 0 : index
    %c0_86 = arith.constant 0 : index
    %149 = vector.load %arg6[%c0_85, %c0_86] : memref<64x64xbf16, #tpu.memory_space<vmem>>, vector<64x64xbf16>
    %cst_87 = arith.constant dense<0.000000e+00> : vector<64x64xf32>
    %150 = tpu.matmul %146, %149, %cst_87 {dimension_numbers = #tpu.dot_dimension_numbers<[1], [0], [0], [1], [0, 0, 1, 1], [], []>} : vector<64x64xbf16>, vector<64x64xbf16>, vector<64x64xf32> -> vector<64x64xf32>
    %151 = arith.addf %148, %150 : vector<64x64xf32>
    %152 = vector.shape_cast %151 : vector<64x64xf32> to vector<8x8x64xf32>
    %c0_88 = arith.constant 0 : index
    %c0_89 = arith.constant 0 : index
    %153 = vector.load %arg8[%c0_88, %c0_89] : memref<1x64xf32, #tpu.memory_space<vmem>>, vector<1x64xf32>
    %154 = vector.shape_cast %153 : vector<1x64xf32> to vector<1x1x64xf32>
    %155 = vector.broadcast %154 : vector<1x1x64xf32> to vector<8x8x64xf32>
    %156 = arith.addf %152, %155 : vector<8x8x64xf32>
    %c0_90 = arith.constant 0 : index
    %c0_91 = arith.constant 0 : index
    %c0_92 = arith.constant 0 : index
    %157 = vector.load %arg12[%c0_90, %c0_91, %c0_92] : memref<8x8x64xf32, #tpu.memory_space<vmem>>, vector<8x8x64xf32>
    tpu.vector_store %arg12[%c0_90, %c0_91, %c0_92], %156 {strides = array<i32>} : memref<8x8x64xf32, #tpu.memory_space<vmem>>, vector<8x8x64xf32>,
    %c0_93 = arith.constant 0 : index
    %c0_94 = arith.constant 0 : index
    %158 = vector.load %arg7[%c0_93, %c0_94] : memref<64x64xbf16, #tpu.memory_space<vmem>>, vector<64x64xbf16>
    %cst_95 = arith.constant 0.000000e+00 : f32
    %159 = vector.broadcast %cst_95 : f32 to vector<8x64xf32>
    %c0_i32_96 = arith.constant 0 : i32
    %160 = arith.index_cast %c0_i32_96 : i32 to index
    %c0_97 = arith.constant 0 : index
    %c0_98 = arith.constant 0 : index
    %161 = vector.load %arg12[%160, %c0_97, %c0_98] : memref<8x8x64xf32, #tpu.memory_space<vmem>>, vector<1x8x64xf32>
    %162 = vector.shape_cast %161 : vector<1x8x64xf32> to vector<8x64xf32>
    %163 = arith.truncf %159 : vector<8x64xf32> to vector<8x64xbf16>
    %cst_99 = arith.constant dense<0.000000e+00> : vector<8x64xf32>
    %164 = tpu.matmul %163, %158, %cst_99 {dimension_numbers = #tpu.dot_dimension_numbers<[1], [0], [0], [1], [0, 0, 1, 1], [], []>} : vector<8x64xbf16>, vector<64x64xbf16>, vector<8x64xf32> -> vector<8x64xf32>
    %165 = arith.addf %162, %164 : vector<8x64xf32>
    %166 = math.tanh %165 : vector<8x64xf32>
    %c1_i32_100 = arith.constant 1 : i32
    %167 = arith.index_cast %c1_i32_100 : i32 to index
    %c0_101 = arith.constant 0 : index
    %c0_102 = arith.constant 0 : index
    %168 = vector.load %arg12[%167, %c0_101, %c0_102] : memref<8x8x64xf32, #tpu.memory_space<vmem>>, vector<1x8x64xf32>
    %169 = vector.shape_cast %168 : vector<1x8x64xf32> to vector<8x64xf32>
    %170 = arith.truncf %166 : vector<8x64xf32> to vector<8x64xbf16>
    %cst_103 = arith.constant dense<0.000000e+00> : vector<8x64xf32>
    %171 = tpu.matmul %170, %158, %cst_103 {dimension_numbers = #tpu.dot_dimension_numbers<[1], [0], [0], [1], [0, 0, 1, 1], [], []>} : vector<8x64xbf16>, vector<64x64xbf16>, vector<8x64xf32> -> vector<8x64xf32>
    %172 = arith.addf %169, %171 : vector<8x64xf32>
    %173 = math.tanh %172 : vector<8x64xf32>
    %c2_i32_104 = arith.constant 2 : i32
    %174 = arith.index_cast %c2_i32_104 : i32 to index
    %c0_105 = arith.constant 0 : index
    %c0_106 = arith.constant 0 : index
    %175 = vector.load %arg12[%174, %c0_105, %c0_106] : memref<8x8x64xf32, #tpu.memory_space<vmem>>, vector<1x8x64xf32>
    %176 = vector.shape_cast %175 : vector<1x8x64xf32> to vector<8x64xf32>
    %177 = arith.truncf %173 : vector<8x64xf32> to vector<8x64xbf16>
    %cst_107 = arith.constant dense<0.000000e+00> : vector<8x64xf32>
    %178 = tpu.matmul %177, %158, %cst_107 {dimension_numbers = #tpu.dot_dimension_numbers<[1], [0], [0], [1], [0, 0, 1, 1], [], []>} : vector<8x64xbf16>, vector<64x64xbf16>, vector<8x64xf32> -> vector<8x64xf32>
    %179 = arith.addf %176, %178 : vector<8x64xf32>
    %180 = math.tanh %179 : vector<8x64xf32>
    %c3_i32_108 = arith.constant 3 : i32
    %181 = arith.index_cast %c3_i32_108 : i32 to index
    %c0_109 = arith.constant 0 : index
    %c0_110 = arith.constant 0 : index
    %182 = vector.load %arg12[%181, %c0_109, %c0_110] : memref<8x8x64xf32, #tpu.memory_space<vmem>>, vector<1x8x64xf32>
    %183 = vector.shape_cast %182 : vector<1x8x64xf32> to vector<8x64xf32>
    %184 = arith.truncf %180 : vector<8x64xf32> to vector<8x64xbf16>
    %cst_111 = arith.constant dense<0.000000e+00> : vector<8x64xf32>
    %185 = tpu.matmul %184, %158, %cst_111 {dimension_numbers = #tpu.dot_dimension_numbers<[1], [0], [0], [1], [0, 0, 1, 1], [], []>} : vector<8x64xbf16>, vector<64x64xbf16>, vector<8x64xf32> -> vector<8x64xf32>
    %186 = arith.addf %183, %185 : vector<8x64xf32>
    %187 = math.tanh %186 : vector<8x64xf32>
    %c4_i32_112 = arith.constant 4 : i32
    %188 = arith.index_cast %c4_i32_112 : i32 to index
    %c0_113 = arith.constant 0 : index
    %c0_114 = arith.constant 0 : index
    %189 = vector.load %arg12[%188, %c0_113, %c0_114] : memref<8x8x64xf32, #tpu.memory_space<vmem>>, vector<1x8x64xf32>
    %190 = vector.shape_cast %189 : vector<1x8x64xf32> to vector<8x64xf32>
    %191 = arith.truncf %187 : vector<8x64xf32> to vector<8x64xbf16>
    %cst_115 = arith.constant dense<0.000000e+00> : vector<8x64xf32>
    %192 = tpu.matmul %191, %158, %cst_115 {dimension_numbers = #tpu.dot_dimension_numbers<[1], [0], [0], [1], [0, 0, 1, 1], [], []>} : vector<8x64xbf16>, vector<64x64xbf16>, vector<8x64xf32> -> vector<8x64xf32>
    %193 = arith.addf %190, %192 : vector<8x64xf32>
    %194 = math.tanh %193 : vector<8x64xf32>
    %c5_i32_116 = arith.constant 5 : i32
    %195 = arith.index_cast %c5_i32_116 : i32 to index
    %c0_117 = arith.constant 0 : index
    %c0_118 = arith.constant 0 : index
    %196 = vector.load %arg12[%195, %c0_117, %c0_118] : memref<8x8x64xf32, #tpu.memory_space<vmem>>, vector<1x8x64xf32>
    %197 = vector.shape_cast %196 : vector<1x8x64xf32> to vector<8x64xf32>
    %198 = arith.truncf %194 : vector<8x64xf32> to vector<8x64xbf16>
    %cst_119 = arith.constant dense<0.000000e+00> : vector<8x64xf32>
    %199 = tpu.matmul %198, %158, %cst_119 {dimension_numbers = #tpu.dot_dimension_numbers<[1], [0], [0], [1], [0, 0, 1, 1], [], []>} : vector<8x64xbf16>, vector<64x64xbf16>, vector<8x64xf32> -> vector<8x64xf32>
    %200 = arith.addf %197, %199 : vector<8x64xf32>
    %201 = math.tanh %200 : vector<8x64xf32>
    %c6_i32_120 = arith.constant 6 : i32
    %202 = arith.index_cast %c6_i32_120 : i32 to index
    %c0_121 = arith.constant 0 : index
    %c0_122 = arith.constant 0 : index
    %203 = vector.load %arg12[%202, %c0_121, %c0_122] : memref<8x8x64xf32, #tpu.memory_space<vmem>>, vector<1x8x64xf32>
    %204 = vector.shape_cast %203 : vector<1x8x64xf32> to vector<8x64xf32>
    %205 = arith.truncf %201 : vector<8x64xf32> to vector<8x64xbf16>
    %cst_123 = arith.constant dense<0.000000e+00> : vector<8x64xf32>
    %206 = tpu.matmul %205, %158, %cst_123 {dimension_numbers = #tpu.dot_dimension_numbers<[1], [0], [0], [1], [0, 0, 1, 1], [], []>} : vector<8x64xbf16>, vector<64x64xbf16>, vector<8x64xf32> -> vector<8x64xf32>
    %207 = arith.addf %204, %206 : vector<8x64xf32>
    %208 = math.tanh %207 : vector<8x64xf32>
    %c7_i32_124 = arith.constant 7 : i32
    %209 = arith.index_cast %c7_i32_124 : i32 to index
    %c0_125 = arith.constant 0 : index
    %c0_126 = arith.constant 0 : index
    %210 = vector.load %arg12[%209, %c0_125, %c0_126] : memref<8x8x64xf32, #tpu.memory_space<vmem>>, vector<1x8x64xf32>
    %211 = vector.shape_cast %210 : vector<1x8x64xf32> to vector<8x64xf32>
    %212 = arith.truncf %208 : vector<8x64xf32> to vector<8x64xbf16>
    %cst_127 = arith.constant dense<0.000000e+00> : vector<8x64xf32>
    %213 = tpu.matmul %212, %158, %cst_127 {dimension_numbers = #tpu.dot_dimension_numbers<[1], [0], [0], [1], [0, 0, 1, 1], [], []>} : vector<8x64xbf16>, vector<64x64xbf16>, vector<8x64xf32> -> vector<8x64xf32>
    %214 = arith.addf %211, %213 : vector<8x64xf32>
    %215 = math.tanh %214 : vector<8x64xf32>
    %c8_i32_128 = arith.constant 8 : i32
    %216 = tpu.concatenate %131, %215 in 1 : vector<8x64xf32>, vector<8x64xf32> -> vector<8x128xf32>
    %217 = arith.truncf %216 : vector<8x128xf32> to vector<8x128xbf16>
    %c0_129 = arith.constant 0 : index
    %c0_130 = arith.constant 0 : index
    %218 = vector.load %arg9[%c0_129, %c0_130] : memref<128x128xbf16, #tpu.memory_space<vmem>>, vector<128x128xbf16>
    %cst_131 = arith.constant dense<0.000000e+00> : vector<8x128xf32>
    %219 = tpu.matmul %217, %218, %cst_131 {dimension_numbers = #tpu.dot_dimension_numbers<[1], [0], [0], [1], [0, 0, 1, 1], [], []>} : vector<8x128xbf16>, vector<128x128xbf16>, vector<8x128xf32> -> vector<8x128xf32>
    %c0_132 = arith.constant 0 : index
    %c0_133 = arith.constant 0 : index
    %220 = vector.load %arg10[%c0_132, %c0_133] : memref<1x128xf32, #tpu.memory_space<vmem>>, vector<1x128xf32>
    %221 = vector.broadcast %220 : vector<1x128xf32> to vector<8x128xf32>
    %222 = arith.addf %219, %221 : vector<8x128xf32>
    %c0_134 = arith.constant 0 : index
    %c0_135 = arith.constant 0 : index
    %223 = vector.load %arg11[%c0_134, %c0_135] : memref<8x128xf32, #tpu.memory_space<vmem>>, vector<8x128xf32>
    tpu.vector_store %arg11[%c0_134, %c0_135], %222 {strides = array<i32>} : memref<8x128xf32, #tpu.memory_space<vmem>>, vector<8x128xf32>,
    return
  }
  func.func @transform_0(%arg0: i32) -> (i32, i32, i32) {
    %c0_i32 = arith.constant 0 : i32
    %c0_i32_0 = arith.constant 0 : i32
    %c0_i32_1 = arith.constant 0 : i32
    return %c0_i32, %arg0, %c0_i32_0 : i32, i32, i32
  }
  func.func @transform_1(%arg0: i32) -> (i32, i32) {
    %c0_i32 = arith.constant 0 : i32
    %c0_i32_0 = arith.constant 0 : i32
    %c0_i32_1 = arith.constant 0 : i32
    return %c0_i32, %c0_i32_0 : i32, i32
  }
  func.func @transform_2(%arg0: i32) -> (i32, i32) {
    %c0_i32 = arith.constant 0 : i32
    %c0_i32_0 = arith.constant 0 : i32
    %c0_i32_1 = arith.constant 0 : i32
    return %c0_i32, %c0_i32_0 : i32, i32
  }
  func.func @transform_3(%arg0: i32) -> (i32, i32) {
    %c0_i32 = arith.constant 0 : i32
    %c0_i32_0 = arith.constant 0 : i32
    %c0_i32_1 = arith.constant 0 : i32
    return %c0_i32, %c0_i32_0 : i32, i32
  }
  func.func @transform_4(%arg0: i32) -> (i32, i32) {
    %c0_i32 = arith.constant 0 : i32
    %c0_i32_0 = arith.constant 0 : i32
    %c0_i32_1 = arith.constant 0 : i32
    return %c0_i32, %c0_i32_0 : i32, i32
  }
  func.func @transform_5(%arg0: i32) -> (i32, i32) {
    %c0_i32 = arith.constant 0 : i32
    %c0_i32_0 = arith.constant 0 : i32
    %c0_i32_1 = arith.constant 0 : i32
    return %c0_i32, %c0_i32_0 : i32, i32
  }
  func.func @transform_6(%arg0: i32) -> (i32, i32) {
    %c0_i32 = arith.constant 0 : i32
    %c0_i32_0 = arith.constant 0 : i32
    %c0_i32_1 = arith.constant 0 : i32
    return %c0_i32, %c0_i32_0 : i32, i32
  }
  func.func @transform_7(%arg0: i32) -> (i32, i32) {
    %c0_i32 = arith.constant 0 : i32
    %c0_i32_0 = arith.constant 0 : i32
    %c0_i32_1 = arith.constant 0 : i32
    return %c0_i32, %c0_i32_0 : i32, i32
  }
  func.func @transform_8(%arg0: i32) -> (i32, i32) {
    %c0_i32 = arith.constant 0 : i32
    %c0_i32_0 = arith.constant 0 : i32
    %c0_i32_1 = arith.constant 0 : i32
    return %c0_i32, %c0_i32_0 : i32, i32
  }
  func.func @transform_9(%arg0: i32) -> (i32, i32) {
    %c0_i32 = arith.constant 0 : i32
    %c0_i32_0 = arith.constant 0 : i32
    %c0_i32_1 = arith.constant 0 : i32
    return %c0_i32, %c0_i32_0 : i32, i32
  }
  func.func @transform_10(%arg0: i32) -> (i32, i32) {
    %c0_i32 = arith.constant 0 : i32
    %c0_i32_0 = arith.constant 0 : i32
    return %arg0, %c0_i32 : i32, i32
  }
}

</mosaic_0001>

<llo_original>
// kernel: rnn_forward.1
$region0: #{rnn_forward.1}
  #allocation0 [shape = 'u32[]', space=smem, size = 0x4, offset = 0x4, fixed_abs, tag = 'smem constant byte address 0x4 - core index']
  #allocation1 [shape = 'u32[144,128]{1,0:T(1,128)}', space=vmem, size = 0x12000, scoped, tag = 'internal scratch']
  #allocation2 [shape = 'f32[8,8,64]{2,1,0:T(8,128)}', space=vmem, size = 0x8000, scoped, tag = 'scratch operand']
  #allocation3 [shape = 'f32[8,8,64]{2,1,0:T(8,128)}', space=vmem, size = 0x8000, scoped, tag = 'scratch operand']
  #allocation4 [shape = 'f32[8,8,64]{2,1,0:T(8,128)}', space=vmem, size = 0x8000, scoped, tag = 'scratch operand']
  %s0 = inlined_call_operand.vmem [shape: f32[8,8,64], index: 0, kind: input, shape index: {}]
  %s1 = inlined_call_operand.vmem [shape: bf16[64,64], index: 1, kind: input, shape index: {}]
  %s2 = inlined_call_operand.vmem [shape: bf16[64,64], index: 2, kind: input, shape index: {}]
  %s3 = inlined_call_operand.vmem [shape: f32[1,64], index: 3, kind: input, shape index: {}]
  %s4 = inlined_call_operand.vmem [shape: bf16[64,64], index: 4, kind: input, shape index: {}]
  %s5 = inlined_call_operand.vmem [shape: bf16[64,64], index: 5, kind: input, shape index: {}]
  %s6 = inlined_call_operand.vmem [shape: bf16[64,64], index: 6, kind: input, shape index: {}]
  %s7 = inlined_call_operand.vmem [shape: f32[1,64], index: 7, kind: input, shape index: {}]
  %s8 = inlined_call_operand.vmem [shape: bf16[128,128], index: 8, kind: input, shape index: {}]
  %s9 = inlined_call_operand.vmem [shape: f32[1,128], index: 9, kind: input, shape index: {}]
  %s10 = inlined_call_operand.vmem [shape: f32[8,128], index: 10, kind: output, shape index: {}]
  %s11 = sld [smem:[#allocation0]]
  $region50: #{rnn_forward.1} parent=0
    _
  %s13 = ssub.s32 1, %s11
  %s14 = scalar_select 0, %s13, %s11
  // Predicated region
  $region2: #{rnn_forward.1} parent=0 // pred_check
    _
  $region3: #{rnn_forward.1} parent=0 // pred_check_branch
    %16 = sbr.rel (0) target = $region5
  $region4: #{rnn_forward.1} parent=0 // pred_region
    _
  $region5: #{rnn_forward.1} parent=0 // pred_fallthru
    _
  // Predicated region
  $region6: #{rnn_forward.1} parent=0 // pred_check
    _
  $region7: #{rnn_forward.1} parent=0 // pred_check_branch
    %18 = sbr.rel (0) target = $region9
  $region8: #{rnn_forward.1} parent=0 // pred_region
    _
  $region9: #{rnn_forward.1} parent=0 // pred_fallthru
    _
  // Predicated region
  $region10: #{rnn_forward.1} parent=0 // pred_check
    _
  $region11: #{rnn_forward.1} parent=0 // pred_check_branch
    %20 = sbr.rel (0) target = $region13
  $region12: #{rnn_forward.1} parent=0 // pred_region
    _
  $region13: #{rnn_forward.1} parent=0 // pred_fallthru
    _
  // Predicated region
  $region14: #{rnn_forward.1} parent=0 // pred_check
    _
  $region15: #{rnn_forward.1} parent=0 // pred_check_branch
    %22 = sbr.rel (0) target = $region17
  $region16: #{rnn_forward.1} parent=0 // pred_region
    _
  $region17: #{rnn_forward.1} parent=0 // pred_fallthru
    _
  // Predicated region
  $region18: #{rnn_forward.1} parent=0 // pred_check
    _
  $region19: #{rnn_forward.1} parent=0 // pred_check_branch
    %24 = sbr.rel (0) target = $region21
  $region20: #{rnn_forward.1} parent=0 // pred_region
    _
  $region21: #{rnn_forward.1} parent=0 // pred_fallthru
    _
  // Predicated region
  $region22: #{rnn_forward.1} parent=0 // pred_check
    _
  $region23: #{rnn_forward.1} parent=0 // pred_check_branch
    %26 = sbr.rel (0) target = $region25
  $region24: #{rnn_forward.1} parent=0 // pred_region
    _
  $region25: #{rnn_forward.1} parent=0 // pred_fallthru
    _
  // Predicated region
  $region26: #{rnn_forward.1} parent=0 // pred_check
    _
  $region27: #{rnn_forward.1} parent=0 // pred_check_branch
    %28 = sbr.rel (0) target = $region29
  $region28: #{rnn_forward.1} parent=0 // pred_region
    _
  $region29: #{rnn_forward.1} parent=0 // pred_fallthru
    _
  // Predicated region
  $region30: #{rnn_forward.1} parent=0 // pred_check
    _
  $region31: #{rnn_forward.1} parent=0 // pred_check_branch
    %30 = sbr.rel (0) target = $region33
  $region32: #{rnn_forward.1} parent=0 // pred_region
    _
  $region33: #{rnn_forward.1} parent=0 // pred_fallthru
    _
  // Predicated region
  $region34: #{rnn_forward.1} parent=0 // pred_check
    _
  $region35: #{rnn_forward.1} parent=0 // pred_check_branch
    %32 = sbr.rel (0) target = $region37
  $region36: #{rnn_forward.1} parent=0 // pred_region
    _
  $region37: #{rnn_forward.1} parent=0 // pred_fallthru
    _
  // Predicated region
  $region38: #{rnn_forward.1} parent=0 // pred_check
    _
  $region39: #{rnn_forward.1} parent=0 // pred_check_branch
    %34 = sbr.rel (0) target = $region41
  $region40: #{rnn_forward.1} parent=0 // pred_region
    _
  $region41: #{rnn_forward.1} parent=0 // pred_fallthru
    _
  %v36 = vld [vmem:[%s0] sm:$0xff]
  %v37 = vld [vmem:[%s0 + $0x8] sm:$0xff]
  %v38 = vld [vmem:[%s0 + $0x10] sm:$0xff]
  %v39 = vld [vmem:[%s0 + $0x18] sm:$0xff]
  %v40 = vld [vmem:[%s0 + $0x20] sm:$0xff]
  %v41 = vld [vmem:[%s0 + $0x28] sm:$0xff]
  %v42 = vld [vmem:[%s0 + $0x30] sm:$0xff]
  %v43 = vld [vmem:[%s0 + $0x38] sm:$0xff]
  %v44 = vpack.c.bf16 %v37, %v36
  %v45 = vpack.c.bf16 %v39, %v38
  %v46 = vpack.c.bf16 %v41, %v40
  %v47 = vpack.c.bf16 %v43, %v42
  %v48 = vld [vmem:[%s1] sm:$0xf]
  %v49 = vld [vmem:[%s1 + $0x4] sm:$0xf]
  %v50 = vld [vmem:[%s1 + $0x8] sm:$0xf]
  %v51 = vld [vmem:[%s1 + $0xc] sm:$0xf]
  %v52 = vld [vmem:[%s1 + $0x10] sm:$0xf]
  %v53 = vld [vmem:[%s1 + $0x14] sm:$0xf]
  %v54 = vld [vmem:[%s1 + $0x18] sm:$0xf]
  %v55 = vld [vmem:[%s1 + $0x1c] sm:$0xf]
  %v64 = vunpack.c.l.b16 %v48
  %v65 = vunpack.c.l.b16 %v49
  %v66 = vunpack.c.l.b16 %v50
  %v67 = vunpack.c.l.b16 %v51
  %v68 = vunpack.c.l.b16 %v52
  %v69 = vunpack.c.l.b16 %v53
  %v70 = vunpack.c.l.b16 %v54
  %v71 = vunpack.c.l.b16 %v55
  %v72 = vpack.c.b16 %v65, %v64
  %v73 = vpack.c.b16 %v67, %v66
  %v74 = vpack.c.b16 %v69, %v68
  %v75 = vpack.c.b16 %v71, %v70
  %vm80 = vcmask 523264
  %v82 = vsel %vm80, %v44, 0
  %v85 = vsel %vm80, %v45, 0
  %v88 = vsel %vm80, %v46, 0
  %v91 = vsel %vm80, %v47, 0
  %93 = vmatprep.subr.bf16.mxu0 0
  %94 = vmatpush1.bf16.msra.mxu0 0
  %95 = vmatprep.subr.bf16.mxu0 0
  %96 = vmatpush1.bf16.msra.mxu0 0
  %97 = vmatprep.subr.bf16.mxu0 0
  %98 = vmatpush1.bf16.msra.mxu0 0
  %99 = vmatprep.subr.bf16.mxu0 0
  %100 = vmatpush1.bf16.msra.mxu0 0
  %101 = vmatprep.subr.bf16.mxu0 0
  %102 = vmatpush1.bf16.msra.mxu0 %v75
  %103 = vmatprep.subr.bf16.mxu0 0
  %104 = vmatpush1.bf16.msra.mxu0 %v74
  %105 = vmatprep.subr.bf16.mxu0 0
  %106 = vmatpush1.bf16.msra.mxu0 %v73
  %107 = vmatprep.subr.bf16.mxu0 0
  %108 = vmatpush1.bf16.msra.mxu0 %v72
  %109 = vmatprep.subr.bf16.mxu0 0
  %110 = vmatpush2.bf16.msra.mxu0 0
  %111 = vmatprep.subr.bf16.mxu0 0
  %112 = vmatpush2.bf16.msra.mxu0 0
  %113 = vmatprep.subr.bf16.mxu0 0
  %114 = vmatpush2.bf16.msra.mxu0 0
  %115 = vmatprep.subr.bf16.mxu0 0
  %116 = vmatpush2.bf16.msra.mxu0 0
  %117 = vmatprep.subr.bf16.mxu0 0
  %118 = vmatpush2.bf16.msra.mxu0 0
  %119 = vmatprep.subr.bf16.mxu0 0
  %120 = vmatpush2.bf16.msra.mxu0 0
  %121 = vmatprep.subr.bf16.mxu0 0
  %122 = vmatpush2.bf16.msra.mxu0 0
  %123 = vmatprep.subr.bf16.mxu0 0
  %124 = vmatpush2.bf16.msra.mxu0 0
  %125 = vmatprep.mubr.bf16.mxu0 0
  %126 = vmatmul.mubr.bf16.gmra.mxu0 %v82
  %v127 = vpop.f32.mrf.mxu0
  %v128 = vadd.f32 0.0, %v127
  %v129 = vpop.f32.mrf.mxu0
  %v130 = vpop.f32.mrf.mxu0
  %v131 = vadd.f32 0.0, %v130
  %v132 = vpop.f32.mrf.mxu0
  %133 = vmatprep.mubr.bf16.mxu0 0
  %134 = vmatmul.mubr.bf16.gmra.mxu0 %v85
  %v135 = vpop.f32.mrf.mxu0
  %v136 = vadd.f32 0.0, %v135
  %v137 = vpop.f32.mrf.mxu0
  %v138 = vpop.f32.mrf.mxu0
  %v139 = vadd.f32 0.0, %v138
  %v140 = vpop.f32.mrf.mxu0
  %141 = vmatprep.mubr.bf16.mxu0 0
  %142 = vmatmul.mubr.bf16.gmra.mxu0 %v88
  %v143 = vpop.f32.mrf.mxu0
  %v144 = vadd.f32 0.0, %v143
  %v145 = vpop.f32.mrf.mxu0
  %v146 = vpop.f32.mrf.mxu0
  %v147 = vadd.f32 0.0, %v146
  %v148 = vpop.f32.mrf.mxu0
  %149 = vmatprep.mubr.bf16.mxu0 0
  %150 = vmatmul.mubr.bf16.gmra.mxu0 %v91
  %v151 = vpop.f32.mrf.mxu0
  %v152 = vadd.f32 0.0, %v151
  %v153 = vpop.f32.mrf.mxu0
  %v154 = vpop.f32.mrf.mxu0
  %v155 = vadd.f32 0.0, %v154
  %v156 = vpop.f32.mrf.mxu0
  %157 = vdwg.mxu0
  %v158 = vld [vmem:[%s3] sm:$0x1]
  %v160 = vlaneseq
  %v161 = vshrl.u32 %v160, 7
  %v162 = vsub.s32 0, %v161
  %v163 = vrot.slane %v158, %v162
  %v165 = vadd.f32 %v128, %v163
  %v166 = vadd.f32 %v131, %v163
  %v167 = vadd.f32 %v136, %v163
  %v168 = vadd.f32 %v139, %v163
  %v169 = vadd.f32 %v144, %v163
  %v170 = vadd.f32 %v147, %v163
  %v171 = vadd.f32 %v152, %v163
  %v172 = vadd.f32 %v155, %v163
  %173 = vst.msk [vmem:[#allocation2] sm:$0xff] %vm80, %v165
  %174 = vst.msk [vmem:[#allocation2 + $0x8] sm:$0xff] %vm80, %v166
  %175 = vst.msk [vmem:[#allocation2 + $0x10] sm:$0xff] %vm80, %v167
  %176 = vst.msk [vmem:[#allocation2 + $0x18] sm:$0xff] %vm80, %v168
  %177 = vst.msk [vmem:[#allocation2 + $0x20] sm:$0xff] %vm80, %v169
  %178 = vst.msk [vmem:[#allocation2 + $0x28] sm:$0xff] %vm80, %v170
  %179 = vst.msk [vmem:[#allocation2 + $0x30] sm:$0xff] %vm80, %v171
  %180 = vst.msk [vmem:[#allocation2 + $0x38] sm:$0xff] %vm80, %v172
  %v181 = vld [vmem:[%s2] sm:$0xf]
  %v182 = vld [vmem:[%s2 + $0x4] sm:$0xf]
  %v183 = vld [vmem:[%s2 + $0x8] sm:$0xf]
  %v184 = vld [vmem:[%s2 + $0xc] sm:$0xf]
  %v185 = vld [vmem:[%s2 + $0x10] sm:$0xf]
  %v186 = vld [vmem:[%s2 + $0x14] sm:$0xf]
  %v187 = vld [vmem:[%s2 + $0x18] sm:$0xf]
  %v188 = vld [vmem:[%s2 + $0x1c] sm:$0xf]
  %v189 = vld [vmem:[#allocation2] sm:$0xff]
  %v198 = vunpack.c.l.b16 %v181
  %v199 = vunpack.c.l.b16 %v182
  %v200 = vunpack.c.l.b16 %v183
  %v201 = vunpack.c.l.b16 %v184
  %v202 = vunpack.c.l.b16 %v185
  %v203 = vunpack.c.l.b16 %v186
  %v204 = vunpack.c.l.b16 %v187
  %v205 = vunpack.c.l.b16 %v188
  %v206 = vpack.c.b16 %v199, %v198
  %v207 = vpack.c.b16 %v201, %v200
  %v208 = vpack.c.b16 %v203, %v202
  %v209 = vpack.c.b16 %v205, %v204
  %v215 = vsel %vm80, 0, 0
  %217 = vmatprep.subr.bf16.mxu0 0
  %218 = vmatpush1.bf16.msra.mxu0 0
  %219 = vmatprep.subr.bf16.mxu0 0
  %220 = vmatpush1.bf16.msra.mxu0 0
  %221 = vmatprep.subr.bf16.mxu0 0
  %222 = vmatpush1.bf16.msra.mxu0 0
  %223 = vmatprep.subr.bf16.mxu0 0
  %224 = vmatpush1.bf16.msra.mxu0 0
  %225 = vmatprep.subr.bf16.mxu0 0
  %226 = vmatpush1.bf16.msra.mxu0 %v209
  %227 = vmatprep.subr.bf16.mxu0 0
  %228 = vmatpush1.bf16.msra.mxu0 %v208
  %229 = vmatprep.subr.bf16.mxu0 0
  %230 = vmatpush1.bf16.msra.mxu0 %v207
  %231 = vmatprep.subr.bf16.mxu0 0
  %232 = vmatpush1.bf16.msra.mxu0 %v206
  %233 = vmatprep.subr.bf16.mxu0 0
  %234 = vmatpush2.bf16.msra.mxu0 0
  %235 = vmatprep.subr.bf16.mxu0 0
  %236 = vmatpush2.bf16.msra.mxu0 0
  %237 = vmatprep.subr.bf16.mxu0 0
  %238 = vmatpush2.bf16.msra.mxu0 0
  %239 = vmatprep.subr.bf16.mxu0 0
  %240 = vmatpush2.bf16.msra.mxu0 0
  %241 = vmatprep.subr.bf16.mxu0 0
  %242 = vmatpush2.bf16.msra.mxu0 0
  %243 = vmatprep.subr.bf16.mxu0 0
  %244 = vmatpush2.bf16.msra.mxu0 0
  %245 = vmatprep.subr.bf16.mxu0 0
  %246 = vmatpush2.bf16.msra.mxu0 0
  %247 = vmatprep.subr.bf16.mxu0 0
  %248 = vmatpush2.bf16.msra.mxu0 0
  %249 = vmatprep.mubr.bf16.mxu0 0
  %250 = vmatmul.mubr.bf16.gmra.mxu0 %v215
  %v251 = vpop.f32.mrf.mxu0
  %v252 = vadd.f32 0.0, %v251
  %v253 = vpop.f32.mrf.mxu0
  %v254 = vpop.f32.mrf.mxu0
  %v255 = vpop.f32.mrf.mxu0
  %256 = vdwg.mxu0
  %v257 = vadd.f32 %v189, %v252
  %v258 = vtanh.pop %v257
  %259 = vst.msk [vmem:[#allocation3] sm:$0xff] %vm80, %v258
  %s260 = scalar_lea.vmem [#allocation4], 56
  %261 = vst.msk [vmem:[%s260] sm:$0xff] %vm80, %v258
  %s262 = scalar_lea.vmem [#allocation2], 8
  %v263 = vld [vmem:[%s262] sm:$0xff]
  %v264 = vpack.c.bf16 %v258, %v258
  %v266 = vsel %vm80, %v264, 0
  %268 = vmatprep.subr.bf16.mxu0 0
  %269 = vmatpush1.bf16.msra.mxu0 0
  %270 = vmatprep.subr.bf16.mxu0 0
  %271 = vmatpush1.bf16.msra.mxu0 0
  %272 = vmatprep.subr.bf16.mxu0 0
  %273 = vmatpush1.bf16.msra.mxu0 0
  %274 = vmatprep.subr.bf16.mxu0 0
  %275 = vmatpush1.bf16.msra.mxu0 0
  %276 = vmatprep.subr.bf16.mxu0 0
  %277 = vmatpush1.bf16.msra.mxu0 %v209
  %278 = vmatprep.subr.bf16.mxu0 0
  %279 = vmatpush1.bf16.msra.mxu0 %v208
  %280 = vmatprep.subr.bf16.mxu0 0
  %281 = vmatpush1.bf16.msra.mxu0 %v207
  %282 = vmatprep.subr.bf16.mxu0 0
  %283 = vmatpush1.bf16.msra.mxu0 %v206
  %284 = vmatprep.subr.bf16.mxu0 0
  %285 = vmatpush2.bf16.msra.mxu0 0
  %286 = vmatprep.subr.bf16.mxu0 0
  %287 = vmatpush2.bf16.msra.mxu0 0
  %288 = vmatprep.subr.bf16.mxu0 0
  %289 = vmatpush2.bf16.msra.mxu0 0
  %290 = vmatprep.subr.bf16.mxu0 0
  %291 = vmatpush2.bf16.msra.mxu0 0
  %292 = vmatprep.subr.bf16.mxu0 0
  %293 = vmatpush2.bf16.msra.mxu0 0
  %294 = vmatprep.subr.bf16.mxu0 0
  %295 = vmatpush2.bf16.msra.mxu0 0
  %296 = vmatprep.subr.bf16.mxu0 0
  %297 = vmatpush2.bf16.msra.mxu0 0
  %298 = vmatprep.subr.bf16.mxu0 0
  %299 = vmatpush2.bf16.msra.mxu0 0
  %300 = vmatprep.mubr.bf16.mxu0 0
  %301 = vmatmul.mubr.bf16.gmra.mxu0 %v266
  %v302 = vpop.f32.mrf.mxu0
  %v303 = vadd.f32 0.0, %v302
  %v304 = vpop.f32.mrf.mxu0
  %v305 = vpop.f32.mrf.mxu0
  %v306 = vpop.f32.mrf.mxu0
  %307 = vdwg.mxu0
  %v308 = vadd.f32 %v263, %v303
  %v309 = vtanh.pop %v308
  %s310 = scalar_lea.vmem [#allocation3], 8
  %311 = vst.msk [vmem:[%s310] sm:$0xff] %vm80, %v309
  %s312 = scalar_lea.vmem [#allocation4], 48
  %313 = vst.msk [vmem:[%s312] sm:$0xff] %vm80, %v309
  %s314 = scalar_lea.vmem [#allocation2], 16
  %v315 = vld [vmem:[%s314] sm:$0xff]
  %v316 = vpack.c.bf16 %v309, %v309
  %v318 = vsel %vm80, %v316, 0
  %320 = vmatprep.subr.bf16.mxu0 0
  %321 = vmatpush1.bf16.msra.mxu0 0
  %322 = vmatprep.subr.bf16.mxu0 0
  %323 = vmatpush1.bf16.msra.mxu0 0
  %324 = vmatprep.subr.bf16.mxu0 0
  %325 = vmatpush1.bf16.msra.mxu0 0
  %326 = vmatprep.subr.bf16.mxu0 0
  %327 = vmatpush1.bf16.msra.mxu0 0
  %328 = vmatprep.subr.bf16.mxu0 0
  %329 = vmatpush1.bf16.msra.mxu0 %v209
  %330 = vmatprep.subr.bf16.mxu0 0
  %331 = vmatpush1.bf16.msra.mxu0 %v208
  %332 = vmatprep.subr.bf16.mxu0 0
  %333 = vmatpush1.bf16.msra.mxu0 %v207
  %334 = vmatprep.subr.bf16.mxu0 0
  %335 = vmatpush1.bf16.msra.mxu0 %v206
  %336 = vmatprep.subr.bf16.mxu0 0
  %337 = vmatpush2.bf16.msra.mxu0 0
  %338 = vmatprep.subr.bf16.mxu0 0
  %339 = vmatpush2.bf16.msra.mxu0 0
  %340 = vmatprep.subr.bf16.mxu0 0
  %341 = vmatpush2.bf16.msra.mxu0 0
  %342 = vmatprep.subr.bf16.mxu0 0
  %343 = vmatpush2.bf16.msra.mxu0 0
  %344 = vmatprep.subr.bf16.mxu0 0
  %345 = vmatpush2.bf16.msra.mxu0 0
  %346 = vmatprep.subr.bf16.mxu0 0
  %347 = vmatpush2.bf16.msra.mxu0 0
  %348 = vmatprep.subr.bf16.mxu0 0
  %349 = vmatpush2.bf16.msra.mxu0 0
  %350 = vmatprep.subr.bf16.mxu0 0
  %351 = vmatpush2.bf16.msra.mxu0 0
  %352 = vmatprep.mubr.bf16.mxu0 0
  %353 = vmatmul.mubr.bf16.gmra.mxu0 %v318
  %v354 = vpop.f32.mrf.mxu0
  %v355 = vadd.f32 0.0, %v354
  %v356 = vpop.f32.mrf.mxu0
  %v357 = vpop.f32.mrf.mxu0
  %v358 = vpop.f32.mrf.mxu0
  %359 = vdwg.mxu0
  %v360 = vadd.f32 %v315, %v355
  %v361 = vtanh.pop %v360
  %s362 = scalar_lea.vmem [#allocation3], 16
  %363 = vst.msk [vmem:[%s362] sm:$0xff] %vm80, %v361
  %s364 = scalar_lea.vmem [#allocation4], 40
  %365 = vst.msk [vmem:[%s364] sm:$0xff] %vm80, %v361
  %s366 = scalar_lea.vmem [#allocation2], 24
  %v367 = vld [vmem:[%s366] sm:$0xff]
  %v368 = vpack.c.bf16 %v361, %v361
  %v370 = vsel %vm80, %v368, 0
  %372 = vmatprep.subr.bf16.mxu0 0
  %373 = vmatpush1.bf16.msra.mxu0 0
  %374 = vmatprep.subr.bf16.mxu0 0
  %375 = vmatpush1.bf16.msra.mxu0 0
  %376 = vmatprep.subr.bf16.mxu0 0
  %377 = vmatpush1.bf16.msra.mxu0 0
  %378 = vmatprep.subr.bf16.mxu0 0
  %379 = vmatpush1.bf16.msra.mxu0 0
  %380 = vmatprep.subr.bf16.mxu0 0
  %381 = vmatpush1.bf16.msra.mxu0 %v209
  %382 = vmatprep.subr.bf16.mxu0 0
  %383 = vmatpush1.bf16.msra.mxu0 %v208
  %384 = vmatprep.subr.bf16.mxu0 0
  %385 = vmatpush1.bf16.msra.mxu0 %v207
  %386 = vmatprep.subr.bf16.mxu0 0
  %387 = vmatpush1.bf16.msra.mxu0 %v206
  %388 = vmatprep.subr.bf16.mxu0 0
  %389 = vmatpush2.bf16.msra.mxu0 0
  %390 = vmatprep.subr.bf16.mxu0 0
  %391 = vmatpush2.bf16.msra.mxu0 0
  %392 = vmatprep.subr.bf16.mxu0 0
  %393 = vmatpush2.bf16.msra.mxu0 0
  %394 = vmatprep.subr.bf16.mxu0 0
  %395 = vmatpush2.bf16.msra.mxu0 0
  %396 = vmatprep.subr.bf16.mxu0 0
  %397 = vmatpush2.bf16.msra.mxu0 0
  %398 = vmatprep.subr.bf16.mxu0 0
  %399 = vmatpush2.bf16.msra.mxu0 0
  %400 = vmatprep.subr.bf16.mxu0 0
  %401 = vmatpush2.bf16.msra.mxu0 0
  %402 = vmatprep.subr.bf16.mxu0 0
  %403 = vmatpush2.bf16.msra.mxu0 0
  %404 = vmatprep.mubr.bf16.mxu0 0
  %405 = vmatmul.mubr.bf16.gmra.mxu0 %v370
  %v406 = vpop.f32.mrf.mxu0
  %v407 = vadd.f32 0.0, %v406
  %v408 = vpop.f32.mrf.mxu0
  %v409 = vpop.f32.mrf.mxu0
  %v410 = vpop.f32.mrf.mxu0
  %411 = vdwg.mxu0
  %v412 = vadd.f32 %v367, %v407
  %v413 = vtanh.pop %v412
  %s414 = scalar_lea.vmem [#allocation3], 24
  %415 = vst.msk [vmem:[%s414] sm:$0xff] %vm80, %v413
  %s416 = scalar_lea.vmem [#allocation4], 32
  %417 = vst.msk [vmem:[%s416] sm:$0xff] %vm80, %v413
  %s418 = scalar_lea.vmem [#allocation2], 32
  %v419 = vld [vmem:[%s418] sm:$0xff]
  %v420 = vpack.c.bf16 %v413, %v413
  %v422 = vsel %vm80, %v420, 0
  %424 = vmatprep.subr.bf16.mxu0 0
  %425 = vmatpush1.bf16.msra.mxu0 0
  %426 = vmatprep.subr.bf16.mxu0 0
  %427 = vmatpush1.bf16.msra.mxu0 0
  %428 = vmatprep.subr.bf16.mxu0 0
  %429 = vmatpush1.bf16.msra.mxu0 0
  %430 = vmatprep.subr.bf16.mxu0 0
  %431 = vmatpush1.bf16.msra.mxu0 0
  %432 = vmatprep.subr.bf16.mxu0 0
  %433 = vmatpush1.bf16.msra.mxu0 %v209
  %434 = vmatprep.subr.bf16.mxu0 0
  %435 = vmatpush1.bf16.msra.mxu0 %v208
  %436 = vmatprep.subr.bf16.mxu0 0
  %437 = vmatpush1.bf16.msra.mxu0 %v207
  %438 = vmatprep.subr.bf16.mxu0 0
  %439 = vmatpush1.bf16.msra.mxu0 %v206
  %440 = vmatprep.subr.bf16.mxu0 0
  %441 = vmatpush2.bf16.msra.mxu0 0
  %442 = vmatprep.subr.bf16.mxu0 0
  %443 = vmatpush2.bf16.msra.mxu0 0
  %444 = vmatprep.subr.bf16.mxu0 0
  %445 = vmatpush2.bf16.msra.mxu0 0
  %446 = vmatprep.subr.bf16.mxu0 0
  %447 = vmatpush2.bf16.msra.mxu0 0
  %448 = vmatprep.subr.bf16.mxu0 0
  %449 = vmatpush2.bf16.msra.mxu0 0
  %450 = vmatprep.subr.bf16.mxu0 0
  %451 = vmatpush2.bf16.msra.mxu0 0
  %452 = vmatprep.subr.bf16.mxu0 0
  %453 = vmatpush2.bf16.msra.mxu0 0
  %454 = vmatprep.subr.bf16.mxu0 0
  %455 = vmatpush2.bf16.msra.mxu0 0
  %456 = vmatprep.mubr.bf16.mxu0 0
  %457 = vmatmul.mubr.bf16.gmra.mxu0 %v422
  %v458 = vpop.f32.mrf.mxu0
  %v459 = vadd.f32 0.0, %v458
  %v460 = vpop.f32.mrf.mxu0
  %v461 = vpop.f32.mrf.mxu0
  %v462 = vpop.f32.mrf.mxu0
  %463 = vdwg.mxu0
  %v464 = vadd.f32 %v419, %v459
  %v465 = vtanh.pop %v464
  %s466 = scalar_lea.vmem [#allocation3], 32
  %467 = vst.msk [vmem:[%s466] sm:$0xff] %vm80, %v465
  %s468 = scalar_lea.vmem [#allocation4], 24
  %469 = vst.msk [vmem:[%s468] sm:$0xff] %vm80, %v465
  %s470 = scalar_lea.vmem [#allocation2], 40
  %v471 = vld [vmem:[%s470] sm:$0xff]
  %v472 = vpack.c.bf16 %v465, %v465
  %v474 = vsel %vm80, %v472, 0
  %476 = vmatprep.subr.bf16.mxu0 0
  %477 = vmatpush1.bf16.msra.mxu0 0
  %478 = vmatprep.subr.bf16.mxu0 0
  %479 = vmatpush1.bf16.msra.mxu0 0
  %480 = vmatprep.subr.bf16.mxu0 0
  %481 = vmatpush1.bf16.msra.mxu0 0
  %482 = vmatprep.subr.bf16.mxu0 0
  %483 = vmatpush1.bf16.msra.mxu0 0
  %484 = vmatprep.subr.bf16.mxu0 0
  %485 = vmatpush1.bf16.msra.mxu0 %v209
  %486 = vmatprep.subr.bf16.mxu0 0
  %487 = vmatpush1.bf16.msra.mxu0 %v208
  %488 = vmatprep.subr.bf16.mxu0 0
  %489 = vmatpush1.bf16.msra.mxu0 %v207
  %490 = vmatprep.subr.bf16.mxu0 0
  %491 = vmatpush1.bf16.msra.mxu0 %v206
  %492 = vmatprep.subr.bf16.mxu0 0
  %493 = vmatpush2.bf16.msra.mxu0 0
  %494 = vmatprep.subr.bf16.mxu0 0
  %495 = vmatpush2.bf16.msra.mxu0 0
  %496 = vmatprep.subr.bf16.mxu0 0
  %497 = vmatpush2.bf16.msra.mxu0 0
  %498 = vmatprep.subr.bf16.mxu0 0
  %499 = vmatpush2.bf16.msra.mxu0 0
  %500 = vmatprep.subr.bf16.mxu0 0
  %501 = vmatpush2.bf16.msra.mxu0 0
  %502 = vmatprep.subr.bf16.mxu0 0
  %503 = vmatpush2.bf16.msra.mxu0 0
  %504 = vmatprep.subr.bf16.mxu0 0
  %505 = vmatpush2.bf16.msra.mxu0 0
  %506 = vmatprep.subr.bf16.mxu0 0
  %507 = vmatpush2.bf16.msra.mxu0 0
  %508 = vmatprep.mubr.bf16.mxu0 0
  %509 = vmatmul.mubr.bf16.gmra.mxu0 %v474
  %v510 = vpop.f32.mrf.mxu0
  %v511 = vadd.f32 0.0, %v510
  %v512 = vpop.f32.mrf.mxu0
  %v513 = vpop.f32.mrf.mxu0
  %v514 = vpop.f32.mrf.mxu0
  %515 = vdwg.mxu0
  %v516 = vadd.f32 %v471, %v511
  %v517 = vtanh.pop %v516
  %s518 = scalar_lea.vmem [#allocation3], 40
  %519 = vst.msk [vmem:[%s518] sm:$0xff] %vm80, %v517
  %s520 = scalar_lea.vmem [#allocation4], 16
  %521 = vst.msk [vmem:[%s520] sm:$0xff] %vm80, %v517
  %s522 = scalar_lea.vmem [#allocation2], 48
  %v523 = vld [vmem:[%s522] sm:$0xff]
  %v524 = vpack.c.bf16 %v517, %v517
  %v526 = vsel %vm80, %v524, 0
  %528 = vmatprep.subr.bf16.mxu0 0
  %529 = vmatpush1.bf16.msra.mxu0 0
  %530 = vmatprep.subr.bf16.mxu0 0
  %531 = vmatpush1.bf16.msra.mxu0 0
  %532 = vmatprep.subr.bf16.mxu0 0
  %533 = vmatpush1.bf16.msra.mxu0 0
  %534 = vmatprep.subr.bf16.mxu0 0
  %535 = vmatpush1.bf16.msra.mxu0 0
  %536 = vmatprep.subr.bf16.mxu0 0
  %537 = vmatpush1.bf16.msra.mxu0 %v209
  %538 = vmatprep.subr.bf16.mxu0 0
  %539 = vmatpush1.bf16.msra.mxu0 %v208
  %540 = vmatprep.subr.bf16.mxu0 0
  %541 = vmatpush1.bf16.msra.mxu0 %v207
  %542 = vmatprep.subr.bf16.mxu0 0
  %543 = vmatpush1.bf16.msra.mxu0 %v206
  %544 = vmatprep.subr.bf16.mxu0 0
  %545 = vmatpush2.bf16.msra.mxu0 0
  %546 = vmatprep.subr.bf16.mxu0 0
  %547 = vmatpush2.bf16.msra.mxu0 0
  %548 = vmatprep.subr.bf16.mxu0 0
  %549 = vmatpush2.bf16.msra.mxu0 0
  %550 = vmatprep.subr.bf16.mxu0 0
  %551 = vmatpush2.bf16.msra.mxu0 0
  %552 = vmatprep.subr.bf16.mxu0 0
  %553 = vmatpush2.bf16.msra.mxu0 0
  %554 = vmatprep.subr.bf16.mxu0 0
  %555 = vmatpush2.bf16.msra.mxu0 0
  %556 = vmatprep.subr.bf16.mxu0 0
  %557 = vmatpush2.bf16.msra.mxu0 0
  %558 = vmatprep.subr.bf16.mxu0 0
  %559 = vmatpush2.bf16.msra.mxu0 0
  %560 = vmatprep.mubr.bf16.mxu0 0
  %561 = vmatmul.mubr.bf16.gmra.mxu0 %v526
  %v562 = vpop.f32.mrf.mxu0
  %v563 = vadd.f32 0.0, %v562
  %v564 = vpop.f32.mrf.mxu0
  %v565 = vpop.f32.mrf.mxu0
  %v566 = vpop.f32.mrf.mxu0
  %567 = vdwg.mxu0
  %v568 = vadd.f32 %v523, %v563
  %v569 = vtanh.pop %v568
  %s570 = scalar_lea.vmem [#allocation3], 48
  %571 = vst.msk [vmem:[%s570] sm:$0xff] %vm80, %v569
  %s572 = scalar_lea.vmem [#allocation4], 8
  %573 = vst.msk [vmem:[%s572] sm:$0xff] %vm80, %v569
  %s574 = scalar_lea.vmem [#allocation2], 56
  %v575 = vld [vmem:[%s574] sm:$0xff]
  %v576 = vpack.c.bf16 %v569, %v569
  %v578 = vsel %vm80, %v576, 0
  %580 = vmatprep.subr.bf16.mxu0 0
  %581 = vmatpush1.bf16.msra.mxu0 0
  %582 = vmatprep.subr.bf16.mxu0 0
  %583 = vmatpush1.bf16.msra.mxu0 0
  %584 = vmatprep.subr.bf16.mxu0 0
  %585 = vmatpush1.bf16.msra.mxu0 0
  %586 = vmatprep.subr.bf16.mxu0 0
  %587 = vmatpush1.bf16.msra.mxu0 0
  %588 = vmatprep.subr.bf16.mxu0 0
  %589 = vmatpush1.bf16.msra.mxu0 %v209
  %590 = vmatprep.subr.bf16.mxu0 0
  %591 = vmatpush1.bf16.msra.mxu0 %v208
  %592 = vmatprep.subr.bf16.mxu0 0
  %593 = vmatpush1.bf16.msra.mxu0 %v207
  %594 = vmatprep.subr.bf16.mxu0 0
  %595 = vmatpush1.bf16.msra.mxu0 %v206
  %596 = vmatprep.subr.bf16.mxu0 0
  %597 = vmatpush2.bf16.msra.mxu0 0
  %598 = vmatprep.subr.bf16.mxu0 0
  %599 = vmatpush2.bf16.msra.mxu0 0
  %600 = vmatprep.subr.bf16.mxu0 0
  %601 = vmatpush2.bf16.msra.mxu0 0
  %602 = vmatprep.subr.bf16.mxu0 0
  %603 = vmatpush2.bf16.msra.mxu0 0
  %604 = vmatprep.subr.bf16.mxu0 0
  %605 = vmatpush2.bf16.msra.mxu0 0
  %606 = vmatprep.subr.bf16.mxu0 0
  %607 = vmatpush2.bf16.msra.mxu0 0
  %608 = vmatprep.subr.bf16.mxu0 0
  %609 = vmatpush2.bf16.msra.mxu0 0
  %610 = vmatprep.subr.bf16.mxu0 0
  %611 = vmatpush2.bf16.msra.mxu0 0
  %612 = vmatprep.mubr.bf16.mxu0 0
  %613 = vmatmul.mubr.bf16.gmra.mxu0 %v578
  %v614 = vpop.f32.mrf.mxu0
  %v615 = vadd.f32 0.0, %v614
  %v616 = vpop.f32.mrf.mxu0
  %v617 = vpop.f32.mrf.mxu0
  %v618 = vpop.f32.mrf.mxu0
  %619 = vdwg.mxu0
  %v620 = vadd.f32 %v575, %v615
  %v621 = vtanh.pop %v620
  %s622 = scalar_lea.vmem [#allocation3], 56
  %623 = vst.msk [vmem:[%s622] sm:$0xff] %vm80, %v621
  %624 = vst.msk [vmem:[#allocation4] sm:$0xff] %vm80, %v621
  %v625 = vld [vmem:[#allocation3] sm:$0xff]
  %v626 = vld [vmem:[#allocation3 + $0x8] sm:$0xff]
  %v627 = vld [vmem:[#allocation3 + $0x10] sm:$0xff]
  %v628 = vld [vmem:[#allocation3 + $0x18] sm:$0xff]
  %v629 = vld [vmem:[#allocation3 + $0x20] sm:$0xff]
  %v630 = vld [vmem:[#allocation3 + $0x28] sm:$0xff]
  %v631 = vld [vmem:[#allocation3 + $0x30] sm:$0xff]
  %v632 = vld [vmem:[#allocation3 + $0x38] sm:$0xff]
  %v633 = vpack.c.bf16 %v626, %v625
  %v634 = vpack.c.bf16 %v628, %v627
  %v635 = vpack.c.bf16 %v630, %v629
  %v636 = vpack.c.bf16 %v632, %v631
  %v637 = vld [vmem:[#allocation4] sm:$0xff]
  %v638 = vld [vmem:[#allocation4 + $0x8] sm:$0xff]
  %v639 = vld [vmem:[#allocation4 + $0x10] sm:$0xff]
  %v640 = vld [vmem:[#allocation4 + $0x18] sm:$0xff]
  %v641 = vld [vmem:[#allocation4 + $0x20] sm:$0xff]
  %v642 = vld [vmem:[#allocation4 + $0x28] sm:$0xff]
  %v643 = vld [vmem:[#allocation4 + $0x30] sm:$0xff]
  %v644 = vld [vmem:[#allocation4 + $0x38] sm:$0xff]
  %v645 = vpack.c.bf16 %v638, %v637
  %v646 = vpack.c.bf16 %v640, %v639
  %v647 = vpack.c.bf16 %v642, %v641
  %v648 = vpack.c.bf16 %v644, %v643
  %v649 = vld [vmem:[%s4] sm:$0xf]
  %v650 = vld [vmem:[%s4 + $0x4] sm:$0xf]
  %v651 = vld [vmem:[%s4 + $0x8] sm:$0xf]
  %v652 = vld [vmem:[%s4 + $0xc] sm:$0xf]
  %v653 = vld [vmem:[%s4 + $0x10] sm:$0xf]
  %v654 = vld [vmem:[%s4 + $0x14] sm:$0xf]
  %v655 = vld [vmem:[%s4 + $0x18] sm:$0xf]
  %v656 = vld [vmem:[%s4 + $0x1c] sm:$0xf]
  %v657 = vld [vmem:[%s5] sm:$0xf]
  %v658 = vld [vmem:[%s5 + $0x4] sm:$0xf]
  %v659 = vld [vmem:[%s5 + $0x8] sm:$0xf]
  %v660 = vld [vmem:[%s5 + $0xc] sm:$0xf]
  %v661 = vld [vmem:[%s5 + $0x10] sm:$0xf]
  %v662 = vld [vmem:[%s5 + $0x14] sm:$0xf]
  %v663 = vld [vmem:[%s5 + $0x18] sm:$0xf]
  %v664 = vld [vmem:[%s5 + $0x1c] sm:$0xf]
  %v673 = vunpack.c.l.b16 %v657
  %v674 = vunpack.c.l.b16 %v658
  %v675 = vunpack.c.l.b16 %v659
  %v676 = vunpack.c.l.b16 %v660
  %v677 = vunpack.c.l.b16 %v661
  %v678 = vunpack.c.l.b16 %v662
  %v679 = vunpack.c.l.b16 %v663
  %v680 = vunpack.c.l.b16 %v664
  %v681 = vpack.c.b16 %v674, %v673
  %v682 = vpack.c.b16 %v676, %v675
  %v683 = vpack.c.b16 %v678, %v677
  %v684 = vpack.c.b16 %v680, %v679
  %v690 = vsel %vm80, %v645, 0
  %v693 = vsel %vm80, %v646, 0
  %v696 = vsel %vm80, %v647, 0
  %v699 = vsel %vm80, %v648, 0
  %701 = vmatprep.subr.bf16.mxu0 0
  %702 = vmatpush1.bf16.msra.mxu0 0
  %703 = vmatprep.subr.bf16.mxu0 0
  %704 = vmatpush1.bf16.msra.mxu0 0
  %705 = vmatprep.subr.bf16.mxu0 0
  %706 = vmatpush1.bf16.msra.mxu0 0
  %707 = vmatprep.subr.bf16.mxu0 0
  %708 = vmatpush1.bf16.msra.mxu0 0
  %709 = vmatprep.subr.bf16.mxu0 0
  %710 = vmatpush1.bf16.msra.mxu0 %v684
  %711 = vmatprep.subr.bf16.mxu0 0
  %712 = vmatpush1.bf16.msra.mxu0 %v683
  %713 = vmatprep.subr.bf16.mxu0 0
  %714 = vmatpush1.bf16.msra.mxu0 %v682
  %715 = vmatprep.subr.bf16.mxu0 0
  %716 = vmatpush1.bf16.msra.mxu0 %v681
  %717 = vmatprep.subr.bf16.mxu0 0
  %718 = vmatpush2.bf16.msra.mxu0 0
  %719 = vmatprep.subr.bf16.mxu0 0
  %720 = vmatpush2.bf16.msra.mxu0 0
  %721 = vmatprep.subr.bf16.mxu0 0
  %722 = vmatpush2.bf16.msra.mxu0 0
  %723 = vmatprep.subr.bf16.mxu0 0
  %724 = vmatpush2.bf16.msra.mxu0 0
  %725 = vmatprep.subr.bf16.mxu0 0
  %726 = vmatpush2.bf16.msra.mxu0 0
  %727 = vmatprep.subr.bf16.mxu0 0
  %728 = vmatpush2.bf16.msra.mxu0 0
  %729 = vmatprep.subr.bf16.mxu0 0
  %730 = vmatpush2.bf16.msra.mxu0 0
  %731 = vmatprep.subr.bf16.mxu0 0
  %732 = vmatpush2.bf16.msra.mxu0 0
  %733 = vmatprep.mubr.bf16.mxu0 0
  %734 = vmatmul.mubr.bf16.gmra.mxu0 %v690
  %v735 = vpop.f32.mrf.mxu0
  %v736 = vadd.f32 0.0, %v735
  %v737 = vpop.f32.mrf.mxu0
  %v738 = vpop.f32.mrf.mxu0
  %v739 = vadd.f32 0.0, %v738
  %v740 = vpop.f32.mrf.mxu0
  %741 = vmatprep.mubr.bf16.mxu0 0
  %742 = vmatmul.mubr.bf16.gmra.mxu0 %v693
  %v743 = vpop.f32.mrf.mxu0
  %v744 = vadd.f32 0.0, %v743
  %v745 = vpop.f32.mrf.mxu0
  %v746 = vpop.f32.mrf.mxu0
  %v747 = vadd.f32 0.0, %v746
  %v748 = vpop.f32.mrf.mxu0
  %749 = vmatprep.mubr.bf16.mxu0 0
  %750 = vmatmul.mubr.bf16.gmra.mxu0 %v696
  %v751 = vpop.f32.mrf.mxu0
  %v752 = vadd.f32 0.0, %v751
  %v753 = vpop.f32.mrf.mxu0
  %v754 = vpop.f32.mrf.mxu0
  %v755 = vadd.f32 0.0, %v754
  %v756 = vpop.f32.mrf.mxu0
  %757 = vmatprep.mubr.bf16.mxu0 0
  %758 = vmatmul.mubr.bf16.gmra.mxu0 %v699
  %v759 = vpop.f32.mrf.mxu0
  %v760 = vadd.f32 0.0, %v759
  %v761 = vpop.f32.mrf.mxu0
  %v762 = vpop.f32.mrf.mxu0
  %v763 = vadd.f32 0.0, %v762
  %v764 = vpop.f32.mrf.mxu0
  %765 = vdwg.mxu0
  %v774 = vunpack.c.l.b16 %v649
  %v775 = vunpack.c.l.b16 %v650
  %v776 = vunpack.c.l.b16 %v651
  %v777 = vunpack.c.l.b16 %v652
  %v778 = vunpack.c.l.b16 %v653
  %v779 = vunpack.c.l.b16 %v654
  %v780 = vunpack.c.l.b16 %v655
  %v781 = vunpack.c.l.b16 %v656
  %v782 = vpack.c.b16 %v775, %v774
  %v783 = vpack.c.b16 %v777, %v776
  %v784 = vpack.c.b16 %v779, %v778
  %v785 = vpack.c.b16 %v781, %v780
  %v791 = vsel %vm80, %v633, 0
  %v794 = vsel %vm80, %v634, 0
  %v797 = vsel %vm80, %v635, 0
  %v800 = vsel %vm80, %v636, 0
  %802 = vmatprep.subr.bf16.mxu0 0
  %803 = vmatpush1.bf16.msra.mxu0 0
  %804 = vmatprep.subr.bf16.mxu0 0
  %805 = vmatpush1.bf16.msra.mxu0 0
  %806 = vmatprep.subr.bf16.mxu0 0
  %807 = vmatpush1.bf16.msra.mxu0 0
  %808 = vmatprep.subr.bf16.mxu0 0
  %809 = vmatpush1.bf16.msra.mxu0 0
  %810 = vmatprep.subr.bf16.mxu0 0
  %811 = vmatpush1.bf16.msra.mxu0 %v785
  %812 = vmatprep.subr.bf16.mxu0 0
  %813 = vmatpush1.bf16.msra.mxu0 %v784
  %814 = vmatprep.subr.bf16.mxu0 0
  %815 = vmatpush1.bf16.msra.mxu0 %v783
  %816 = vmatprep.subr.bf16.mxu0 0
  %817 = vmatpush1.bf16.msra.mxu0 %v782
  %818 = vmatprep.subr.bf16.mxu0 0
  %819 = vmatpush2.bf16.msra.mxu0 0
  %820 = vmatprep.subr.bf16.mxu0 0
  %821 = vmatpush2.bf16.msra.mxu0 0
  %822 = vmatprep.subr.bf16.mxu0 0
  %823 = vmatpush2.bf16.msra.mxu0 0
  %824 = vmatprep.subr.bf16.mxu0 0
  %825 = vmatpush2.bf16.msra.mxu0 0
  %826 = vmatprep.subr.bf16.mxu0 0
  %827 = vmatpush2.bf16.msra.mxu0 0
  %828 = vmatprep.subr.bf16.mxu0 0
  %829 = vmatpush2.bf16.msra.mxu0 0
  %830 = vmatprep.subr.bf16.mxu0 0
  %831 = vmatpush2.bf16.msra.mxu0 0
  %832 = vmatprep.subr.bf16.mxu0 0
  %833 = vmatpush2.bf16.msra.mxu0 0
  %834 = vmatprep.mubr.bf16.mxu0 0
  %835 = vmatmul.mubr.bf16.gmra.mxu0 %v791
  %v836 = vpop.f32.mrf.mxu0
  %v837 = vadd.f32 %v736, %v836
  %v838 = vpop.f32.mrf.mxu0
  %v839 = vpop.f32.mrf.mxu0
  %v840 = vadd.f32 %v739, %v839
  %v841 = vpop.f32.mrf.mxu0
  %842 = vmatprep.mubr.bf16.mxu0 0
  %843 = vmatmul.mubr.bf16.gmra.mxu0 %v794
  %v844 = vpop.f32.mrf.mxu0
  %v845 = vadd.f32 %v744, %v844
  %v846 = vpop.f32.mrf.mxu0
  %v847 = vpop.f32.mrf.mxu0
  %v848 = vadd.f32 %v747, %v847
  %v849 = vpop.f32.mrf.mxu0
  %850 = vmatprep.mubr.bf16.mxu0 0
  %851 = vmatmul.mubr.bf16.gmra.mxu0 %v797
  %v852 = vpop.f32.mrf.mxu0
  %v853 = vadd.f32 %v752, %v852
  %v854 = vpop.f32.mrf.mxu0
  %v855 = vpop.f32.mrf.mxu0
  %v856 = vadd.f32 %v755, %v855
  %v857 = vpop.f32.mrf.mxu0
  %858 = vmatprep.mubr.bf16.mxu0 0
  %859 = vmatmul.mubr.bf16.gmra.mxu0 %v800
  %v860 = vpop.f32.mrf.mxu0
  %v861 = vadd.f32 %v760, %v860
  %v862 = vpop.f32.mrf.mxu0
  %v863 = vpop.f32.mrf.mxu0
  %v864 = vadd.f32 %v763, %v863
  %v865 = vpop.f32.mrf.mxu0
  %866 = vdwg.mxu0
  %v867 = vld [vmem:[%s7] sm:$0x1]
  %v869 = vlaneseq
  %v870 = vshrl.u32 %v869, 7
  %v871 = vsub.s32 0, %v870
  %v872 = vrot.slane %v867, %v871
  %v874 = vadd.f32 %v837, %v872
  %v875 = vadd.f32 %v840, %v872
  %v876 = vadd.f32 %v845, %v872
  %v877 = vadd.f32 %v848, %v872
  %v878 = vadd.f32 %v853, %v872
  %v879 = vadd.f32 %v856, %v872
  %v880 = vadd.f32 %v861, %v872
  %v881 = vadd.f32 %v864, %v872
  %882 = vst.msk [vmem:[#allocation2] sm:$0xff] %vm80, %v874
  %883 = vst.msk [vmem:[#allocation2 + $0x8] sm:$0xff] %vm80, %v875
  %884 = vst.msk [vmem:[#allocation2 + $0x10] sm:$0xff] %vm80, %v876
  %885 = vst.msk [vmem:[#allocation2 + $0x18] sm:$0xff] %vm80, %v877
  %886 = vst.msk [vmem:[#allocation2 + $0x20] sm:$0xff] %vm80, %v878
  %887 = vst.msk [vmem:[#allocation2 + $0x28] sm:$0xff] %vm80, %v879
  %888 = vst.msk [vmem:[#allocation2 + $0x30] sm:$0xff] %vm80, %v880
  %889 = vst.msk [vmem:[#allocation2 + $0x38] sm:$0xff] %vm80, %v881
  %v890 = vld [vmem:[%s6] sm:$0xf]
  %v891 = vld [vmem:[%s6 + $0x4] sm:$0xf]
  %v892 = vld [vmem:[%s6 + $0x8] sm:$0xf]
  %v893 = vld [vmem:[%s6 + $0xc] sm:$0xf]
  %v894 = vld [vmem:[%s6 + $0x10] sm:$0xf]
  %v895 = vld [vmem:[%s6 + $0x14] sm:$0xf]
  %v896 = vld [vmem:[%s6 + $0x18] sm:$0xf]
  %v897 = vld [vmem:[%s6 + $0x1c] sm:$0xf]
  %v898 = vld [vmem:[#allocation2] sm:$0xff]
  %v907 = vunpack.c.l.b16 %v890
  %v908 = vunpack.c.l.b16 %v891
  %v909 = vunpack.c.l.b16 %v892
  %v910 = vunpack.c.l.b16 %v893
  %v911 = vunpack.c.l.b16 %v894
  %v912 = vunpack.c.l.b16 %v895
  %v913 = vunpack.c.l.b16 %v896
  %v914 = vunpack.c.l.b16 %v897
  %v915 = vpack.c.b16 %v908, %v907
  %v916 = vpack.c.b16 %v910, %v909
  %v917 = vpack.c.b16 %v912, %v911
  %v918 = vpack.c.b16 %v914, %v913
  %923 = vmatprep.subr.bf16.mxu0 0
  %924 = vmatpush1.bf16.msra.mxu0 0
  %925 = vmatprep.subr.bf16.mxu0 0
  %926 = vmatpush1.bf16.msra.mxu0 0
  %927 = vmatprep.subr.bf16.mxu0 0
  %928 = vmatpush1.bf16.msra.mxu0 0
  %929 = vmatprep.subr.bf16.mxu0 0
  %930 = vmatpush1.bf16.msra.mxu0 0
  %931 = vmatprep.subr.bf16.mxu0 0
  %932 = vmatpush1.bf16.msra.mxu0 %v918
  %933 = vmatprep.subr.bf16.mxu0 0
  %934 = vmatpush1.bf16.msra.mxu0 %v917
  %935 = vmatprep.subr.bf16.mxu0 0
  %936 = vmatpush1.bf16.msra.mxu0 %v916
  %937 = vmatprep.subr.bf16.mxu0 0
  %938 = vmatpush1.bf16.msra.mxu0 %v915
  %939 = vmatprep.subr.bf16.mxu0 0
  %940 = vmatpush2.bf16.msra.mxu0 0
  %941 = vmatprep.subr.bf16.mxu0 0
  %942 = vmatpush2.bf16.msra.mxu0 0
  %943 = vmatprep.subr.bf16.mxu0 0
  %944 = vmatpush2.bf16.msra.mxu0 0
  %945 = vmatprep.subr.bf16.mxu0 0
  %946 = vmatpush2.bf16.msra.mxu0 0
  %947 = vmatprep.subr.bf16.mxu0 0
  %948 = vmatpush2.bf16.msra.mxu0 0
  %949 = vmatprep.subr.bf16.mxu0 0
  %950 = vmatpush2.bf16.msra.mxu0 0
  %951 = vmatprep.subr.bf16.mxu0 0
  %952 = vmatpush2.bf16.msra.mxu0 0
  %953 = vmatprep.subr.bf16.mxu0 0
  %954 = vmatpush2.bf16.msra.mxu0 0
  %955 = vmatprep.mubr.bf16.mxu0 0
  %956 = vmatmul.mubr.bf16.gmra.mxu0 %v215
  %v957 = vpop.f32.mrf.mxu0
  %v958 = vadd.f32 0.0, %v957
  %v959 = vpop.f32.mrf.mxu0
  %v960 = vpop.f32.mrf.mxu0
  %v961 = vpop.f32.mrf.mxu0
  %962 = vdwg.mxu0
  %v963 = vadd.f32 %v898, %v958
  %v964 = vtanh.pop %v963
  %v965 = vld [vmem:[%s262] sm:$0xff]
  %v966 = vpack.c.bf16 %v964, %v964
  %v968 = vsel %vm80, %v966, 0
  %970 = vmatprep.subr.bf16.mxu0 0
  %971 = vmatpush1.bf16.msra.mxu0 0
  %972 = vmatprep.subr.bf16.mxu0 0
  %973 = vmatpush1.bf16.msra.mxu0 0
  %974 = vmatprep.subr.bf16.mxu0 0
  %975 = vmatpush1.bf16.msra.mxu0 0
  %976 = vmatprep.subr.bf16.mxu0 0
  %977 = vmatpush1.bf16.msra.mxu0 0
  %978 = vmatprep.subr.bf16.mxu0 0
  %979 = vmatpush1.bf16.msra.mxu0 %v918
  %980 = vmatprep.subr.bf16.mxu0 0
  %981 = vmatpush1.bf16.msra.mxu0 %v917
  %982 = vmatprep.subr.bf16.mxu0 0
  %983 = vmatpush1.bf16.msra.mxu0 %v916
  %984 = vmatprep.subr.bf16.mxu0 0
  %985 = vmatpush1.bf16.msra.mxu0 %v915
  %986 = vmatprep.subr.bf16.mxu0 0
  %987 = vmatpush2.bf16.msra.mxu0 0
  %988 = vmatprep.subr.bf16.mxu0 0
  %989 = vmatpush2.bf16.msra.mxu0 0
  %990 = vmatprep.subr.bf16.mxu0 0
  %991 = vmatpush2.bf16.msra.mxu0 0
  %992 = vmatprep.subr.bf16.mxu0 0
  %993 = vmatpush2.bf16.msra.mxu0 0
  %994 = vmatprep.subr.bf16.mxu0 0
  %995 = vmatpush2.bf16.msra.mxu0 0
  %996 = vmatprep.subr.bf16.mxu0 0
  %997 = vmatpush2.bf16.msra.mxu0 0
  %998 = vmatprep.subr.bf16.mxu0 0
  %999 = vmatpush2.bf16.msra.mxu0 0
  %1000 = vmatprep.subr.bf16.mxu0 0
  %1001 = vmatpush2.bf16.msra.mxu0 0
  %1002 = vmatprep.mubr.bf16.mxu0 0
  %1003 = vmatmul.mubr.bf16.gmra.mxu0 %v968
  %v1004 = vpop.f32.mrf.mxu0
  %v1005 = vadd.f32 0.0, %v1004
  %v1006 = vpop.f32.mrf.mxu0
  %v1007 = vpop.f32.mrf.mxu0
  %v1008 = vpop.f32.mrf.mxu0
  %1009 = vdwg.mxu0
  %v1010 = vadd.f32 %v965, %v1005
  %v1011 = vtanh.pop %v1010
  %v1012 = vld [vmem:[%s314] sm:$0xff]
  %v1013 = vpack.c.bf16 %v1011, %v1011
  %v1015 = vsel %vm80, %v1013, 0
  %1017 = vmatprep.subr.bf16.mxu0 0
  %1018 = vmatpush1.bf16.msra.mxu0 0
  %1019 = vmatprep.subr.bf16.mxu0 0
  %1020 = vmatpush1.bf16.msra.mxu0 0
  %1021 = vmatprep.subr.bf16.mxu0 0
  %1022 = vmatpush1.bf16.msra.mxu0 0
  %1023 = vmatprep.subr.bf16.mxu0 0
  %1024 = vmatpush1.bf16.msra.mxu0 0
  %1025 = vmatprep.subr.bf16.mxu0 0
  %1026 = vmatpush1.bf16.msra.mxu0 %v918
  %1027 = vmatprep.subr.bf16.mxu0 0
  %1028 = vmatpush1.bf16.msra.mxu0 %v917
  %1029 = vmatprep.subr.bf16.mxu0 0
  %1030 = vmatpush1.bf16.msra.mxu0 %v916
  %1031 = vmatprep.subr.bf16.mxu0 0
  %1032 = vmatpush1.bf16.msra.mxu0 %v915
  %1033 = vmatprep.subr.bf16.mxu0 0
  %1034 = vmatpush2.bf16.msra.mxu0 0
  %1035 = vmatprep.subr.bf16.mxu0 0
  %1036 = vmatpush2.bf16.msra.mxu0 0
  %1037 = vmatprep.subr.bf16.mxu0 0
  %1038 = vmatpush2.bf16.msra.mxu0 0
  %1039 = vmatprep.subr.bf16.mxu0 0
  %1040 = vmatpush2.bf16.msra.mxu0 0
  %1041 = vmatprep.subr.bf16.mxu0 0
  %1042 = vmatpush2.bf16.msra.mxu0 0
  %1043 = vmatprep.subr.bf16.mxu0 0
  %1044 = vmatpush2.bf16.msra.mxu0 0
  %1045 = vmatprep.subr.bf16.mxu0 0
  %1046 = vmatpush2.bf16.msra.mxu0 0
  %1047 = vmatprep.subr.bf16.mxu0 0
  %1048 = vmatpush2.bf16.msra.mxu0 0
  %1049 = vmatprep.mubr.bf16.mxu0 0
  %1050 = vmatmul.mubr.bf16.gmra.mxu0 %v1015
  %v1051 = vpop.f32.mrf.mxu0
  %v1052 = vadd.f32 0.0, %v1051
  %v1053 = vpop.f32.mrf.mxu0
  %v1054 = vpop.f32.mrf.mxu0
  %v1055 = vpop.f32.mrf.mxu0
  %1056 = vdwg.mxu0
  %v1057 = vadd.f32 %v1012, %v1052
  %v1058 = vtanh.pop %v1057
  %v1059 = vld [vmem:[%s366] sm:$0xff]
  %v1060 = vpack.c.bf16 %v1058, %v1058
  %v1062 = vsel %vm80, %v1060, 0
  %1064 = vmatprep.subr.bf16.mxu0 0
  %1065 = vmatpush1.bf16.msra.mxu0 0
  %1066 = vmatprep.subr.bf16.mxu0 0
  %1067 = vmatpush1.bf16.msra.mxu0 0
  %1068 = vmatprep.subr.bf16.mxu0 0
  %1069 = vmatpush1.bf16.msra.mxu0 0
  %1070 = vmatprep.subr.bf16.mxu0 0
  %1071 = vmatpush1.bf16.msra.mxu0 0
  %1072 = vmatprep.subr.bf16.mxu0 0
  %1073 = vmatpush1.bf16.msra.mxu0 %v918
  %1074 = vmatprep.subr.bf16.mxu0 0
  %1075 = vmatpush1.bf16.msra.mxu0 %v917
  %1076 = vmatprep.subr.bf16.mxu0 0
  %1077 = vmatpush1.bf16.msra.mxu0 %v916
  %1078 = vmatprep.subr.bf16.mxu0 0
  %1079 = vmatpush1.bf16.msra.mxu0 %v915
  %1080 = vmatprep.subr.bf16.mxu0 0
  %1081 = vmatpush2.bf16.msra.mxu0 0
  %1082 = vmatprep.subr.bf16.mxu0 0
  %1083 = vmatpush2.bf16.msra.mxu0 0
  %1084 = vmatprep.subr.bf16.mxu0 0
  %1085 = vmatpush2.bf16.msra.mxu0 0
  %1086 = vmatprep.subr.bf16.mxu0 0
  %1087 = vmatpush2.bf16.msra.mxu0 0
  %1088 = vmatprep.subr.bf16.mxu0 0
  %1089 = vmatpush2.bf16.msra.mxu0 0
  %1090 = vmatprep.subr.bf16.mxu0 0
  %1091 = vmatpush2.bf16.msra.mxu0 0
  %1092 = vmatprep.subr.bf16.mxu0 0
  %1093 = vmatpush2.bf16.msra.mxu0 0
  %1094 = vmatprep.subr.bf16.mxu0 0
  %1095 = vmatpush2.bf16.msra.mxu0 0
  %1096 = vmatprep.mubr.bf16.mxu0 0
  %1097 = vmatmul.mubr.bf16.gmra.mxu0 %v1062
  %v1098 = vpop.f32.mrf.mxu0
  %v1099 = vadd.f32 0.0, %v1098
  %v1100 = vpop.f32.mrf.mxu0
  %v1101 = vpop.f32.mrf.mxu0
  %v1102 = vpop.f32.mrf.mxu0
  %1103 = vdwg.mxu0
  %v1104 = vadd.f32 %v1059, %v1099
  %v1105 = vtanh.pop %v1104
  %v1106 = vld [vmem:[%s418] sm:$0xff]
  %v1107 = vpack.c.bf16 %v1105, %v1105
  %v1109 = vsel %vm80, %v1107, 0
  %1111 = vmatprep.subr.bf16.mxu0 0
  %1112 = vmatpush1.bf16.msra.mxu0 0
  %1113 = vmatprep.subr.bf16.mxu0 0
  %1114 = vmatpush1.bf16.msra.mxu0 0
  %1115 = vmatprep.subr.bf16.mxu0 0
  %1116 = vmatpush1.bf16.msra.mxu0 0
  %1117 = vmatprep.subr.bf16.mxu0 0
  %1118 = vmatpush1.bf16.msra.mxu0 0
  %1119 = vmatprep.subr.bf16.mxu0 0
  %1120 = vmatpush1.bf16.msra.mxu0 %v918
  %1121 = vmatprep.subr.bf16.mxu0 0
  %1122 = vmatpush1.bf16.msra.mxu0 %v917
  %1123 = vmatprep.subr.bf16.mxu0 0
  %1124 = vmatpush1.bf16.msra.mxu0 %v916
  %1125 = vmatprep.subr.bf16.mxu0 0
  %1126 = vmatpush1.bf16.msra.mxu0 %v915
  %1127 = vmatprep.subr.bf16.mxu0 0
  %1128 = vmatpush2.bf16.msra.mxu0 0
  %1129 = vmatprep.subr.bf16.mxu0 0
  %1130 = vmatpush2.bf16.msra.mxu0 0
  %1131 = vmatprep.subr.bf16.mxu0 0
  %1132 = vmatpush2.bf16.msra.mxu0 0
  %1133 = vmatprep.subr.bf16.mxu0 0
  %1134 = vmatpush2.bf16.msra.mxu0 0
  %1135 = vmatprep.subr.bf16.mxu0 0
  %1136 = vmatpush2.bf16.msra.mxu0 0
  %1137 = vmatprep.subr.bf16.mxu0 0
  %1138 = vmatpush2.bf16.msra.mxu0 0
  %1139 = vmatprep.subr.bf16.mxu0 0
  %1140 = vmatpush2.bf16.msra.mxu0 0
  %1141 = vmatprep.subr.bf16.mxu0 0
  %1142 = vmatpush2.bf16.msra.mxu0 0
  %1143 = vmatprep.mubr.bf16.mxu0 0
  %1144 = vmatmul.mubr.bf16.gmra.mxu0 %v1109
  %v1145 = vpop.f32.mrf.mxu0
  %v1146 = vadd.f32 0.0, %v1145
  %v1147 = vpop.f32.mrf.mxu0
  %v1148 = vpop.f32.mrf.mxu0
  %v1149 = vpop.f32.mrf.mxu0
  %1150 = vdwg.mxu0
  %v1151 = vadd.f32 %v1106, %v1146
  %v1152 = vtanh.pop %v1151
  %v1153 = vld [vmem:[%s470] sm:$0xff]
  %v1154 = vpack.c.bf16 %v1152, %v1152
  %v1156 = vsel %vm80, %v1154, 0
  %1158 = vmatprep.subr.bf16.mxu0 0
  %1159 = vmatpush1.bf16.msra.mxu0 0
  %1160 = vmatprep.subr.bf16.mxu0 0
  %1161 = vmatpush1.bf16.msra.mxu0 0
  %1162 = vmatprep.subr.bf16.mxu0 0
  %1163 = vmatpush1.bf16.msra.mxu0 0
  %1164 = vmatprep.subr.bf16.mxu0 0
  %1165 = vmatpush1.bf16.msra.mxu0 0
  %1166 = vmatprep.subr.bf16.mxu0 0
  %1167 = vmatpush1.bf16.msra.mxu0 %v918
  %1168 = vmatprep.subr.bf16.mxu0 0
  %1169 = vmatpush1.bf16.msra.mxu0 %v917
  %1170 = vmatprep.subr.bf16.mxu0 0
  %1171 = vmatpush1.bf16.msra.mxu0 %v916
  %1172 = vmatprep.subr.bf16.mxu0 0
  %1173 = vmatpush1.bf16.msra.mxu0 %v915
  %1174 = vmatprep.subr.bf16.mxu0 0
  %1175 = vmatpush2.bf16.msra.mxu0 0
  %1176 = vmatprep.subr.bf16.mxu0 0
  %1177 = vmatpush2.bf16.msra.mxu0 0
  %1178 = vmatprep.subr.bf16.mxu0 0
  %1179 = vmatpush2.bf16.msra.mxu0 0
  %1180 = vmatprep.subr.bf16.mxu0 0
  %1181 = vmatpush2.bf16.msra.mxu0 0
  %1182 = vmatprep.subr.bf16.mxu0 0
  %1183 = vmatpush2.bf16.msra.mxu0 0
  %1184 = vmatprep.subr.bf16.mxu0 0
  %1185 = vmatpush2.bf16.msra.mxu0 0
  %1186 = vmatprep.subr.bf16.mxu0 0
  %1187 = vmatpush2.bf16.msra.mxu0 0
  %1188 = vmatprep.subr.bf16.mxu0 0
  %1189 = vmatpush2.bf16.msra.mxu0 0
  %1190 = vmatprep.mubr.bf16.mxu0 0
  %1191 = vmatmul.mubr.bf16.gmra.mxu0 %v1156
  %v1192 = vpop.f32.mrf.mxu0
  %v1193 = vadd.f32 0.0, %v1192
  %v1194 = vpop.f32.mrf.mxu0
  %v1195 = vpop.f32.mrf.mxu0
  %v1196 = vpop.f32.mrf.mxu0
  %1197 = vdwg.mxu0
  %v1198 = vadd.f32 %v1153, %v1193
  %v1199 = vtanh.pop %v1198
  %v1200 = vld [vmem:[%s522] sm:$0xff]
  %v1201 = vpack.c.bf16 %v1199, %v1199
  %v1203 = vsel %vm80, %v1201, 0
  %1205 = vmatprep.subr.bf16.mxu0 0
  %1206 = vmatpush1.bf16.msra.mxu0 0
  %1207 = vmatprep.subr.bf16.mxu0 0
  %1208 = vmatpush1.bf16.msra.mxu0 0
  %1209 = vmatprep.subr.bf16.mxu0 0
  %1210 = vmatpush1.bf16.msra.mxu0 0
  %1211 = vmatprep.subr.bf16.mxu0 0
  %1212 = vmatpush1.bf16.msra.mxu0 0
  %1213 = vmatprep.subr.bf16.mxu0 0
  %1214 = vmatpush1.bf16.msra.mxu0 %v918
  %1215 = vmatprep.subr.bf16.mxu0 0
  %1216 = vmatpush1.bf16.msra.mxu0 %v917
  %1217 = vmatprep.subr.bf16.mxu0 0
  %1218 = vmatpush1.bf16.msra.mxu0 %v916
  %1219 = vmatprep.subr.bf16.mxu0 0
  %1220 = vmatpush1.bf16.msra.mxu0 %v915
  %1221 = vmatprep.subr.bf16.mxu0 0
  %1222 = vmatpush2.bf16.msra.mxu0 0
  %1223 = vmatprep.subr.bf16.mxu0 0
  %1224 = vmatpush2.bf16.msra.mxu0 0
  %1225 = vmatprep.subr.bf16.mxu0 0
  %1226 = vmatpush2.bf16.msra.mxu0 0
  %1227 = vmatprep.subr.bf16.mxu0 0
  %1228 = vmatpush2.bf16.msra.mxu0 0
  %1229 = vmatprep.subr.bf16.mxu0 0
  %1230 = vmatpush2.bf16.msra.mxu0 0
  %1231 = vmatprep.subr.bf16.mxu0 0
  %1232 = vmatpush2.bf16.msra.mxu0 0
  %1233 = vmatprep.subr.bf16.mxu0 0
  %1234 = vmatpush2.bf16.msra.mxu0 0
  %1235 = vmatprep.subr.bf16.mxu0 0
  %1236 = vmatpush2.bf16.msra.mxu0 0
  %1237 = vmatprep.mubr.bf16.mxu0 0
  %1238 = vmatmul.mubr.bf16.gmra.mxu0 %v1203
  %v1239 = vpop.f32.mrf.mxu0
  %v1240 = vadd.f32 0.0, %v1239
  %v1241 = vpop.f32.mrf.mxu0
  %v1242 = vpop.f32.mrf.mxu0
  %v1243 = vpop.f32.mrf.mxu0
  %1244 = vdwg.mxu0
  %v1245 = vadd.f32 %v1200, %v1240
  %v1246 = vtanh.pop %v1245
  %v1247 = vld [vmem:[%s574] sm:$0xff]
  %v1248 = vpack.c.bf16 %v1246, %v1246
  %v1250 = vsel %vm80, %v1248, 0
  %1252 = vmatprep.subr.bf16.mxu0 0
  %1253 = vmatpush1.bf16.msra.mxu0 0
  %1254 = vmatprep.subr.bf16.mxu0 0
  %1255 = vmatpush1.bf16.msra.mxu0 0
  %1256 = vmatprep.subr.bf16.mxu0 0
  %1257 = vmatpush1.bf16.msra.mxu0 0
  %1258 = vmatprep.subr.bf16.mxu0 0
  %1259 = vmatpush1.bf16.msra.mxu0 0
  %1260 = vmatprep.subr.bf16.mxu0 0
  %1261 = vmatpush1.bf16.msra.mxu0 %v918
  %1262 = vmatprep.subr.bf16.mxu0 0
  %1263 = vmatpush1.bf16.msra.mxu0 %v917
  %1264 = vmatprep.subr.bf16.mxu0 0
  %1265 = vmatpush1.bf16.msra.mxu0 %v916
  %1266 = vmatprep.subr.bf16.mxu0 0
  %1267 = vmatpush1.bf16.msra.mxu0 %v915
  %1268 = vmatprep.subr.bf16.mxu0 0
  %1269 = vmatpush2.bf16.msra.mxu0 0
  %1270 = vmatprep.subr.bf16.mxu0 0
  %1271 = vmatpush2.bf16.msra.mxu0 0
  %1272 = vmatprep.subr.bf16.mxu0 0
  %1273 = vmatpush2.bf16.msra.mxu0 0
  %1274 = vmatprep.subr.bf16.mxu0 0
  %1275 = vmatpush2.bf16.msra.mxu0 0
  %1276 = vmatprep.subr.bf16.mxu0 0
  %1277 = vmatpush2.bf16.msra.mxu0 0
  %1278 = vmatprep.subr.bf16.mxu0 0
  %1279 = vmatpush2.bf16.msra.mxu0 0
  %1280 = vmatprep.subr.bf16.mxu0 0
  %1281 = vmatpush2.bf16.msra.mxu0 0
  %1282 = vmatprep.subr.bf16.mxu0 0
  %1283 = vmatpush2.bf16.msra.mxu0 0
  %1284 = vmatprep.mubr.bf16.mxu0 0
  %1285 = vmatmul.mubr.bf16.gmra.mxu0 %v1250
  %v1286 = vpop.f32.mrf.mxu0
  %v1287 = vadd.f32 0.0, %v1286
  %v1288 = vpop.f32.mrf.mxu0
  %v1289 = vpop.f32.mrf.mxu0
  %v1290 = vpop.f32.mrf.mxu0
  %1291 = vdwg.mxu0
  %v1292 = vadd.f32 %v1247, %v1287
  %v1293 = vtanh.pop %v1292
  %1295 = vrot.lane.b32.xlu0 %v1293, 64
  %v1296 = vpop.permute.xlu0 %1295
  %v1298 = vsel %vm80, %v621, %v1296
  %v1299 = vpack.c.bf16 %v1298, %v1298
  %v1300 = vld [vmem:[%s8] sm:$0xf]
  %v1301 = vld [vmem:[%s8 + $0x4] sm:$0xf]
  %v1302 = vld [vmem:[%s8 + $0x8] sm:$0xf]
  %v1303 = vld [vmem:[%s8 + $0xc] sm:$0xf]
  %v1304 = vld [vmem:[%s8 + $0x10] sm:$0xf]
  %v1305 = vld [vmem:[%s8 + $0x14] sm:$0xf]
  %v1306 = vld [vmem:[%s8 + $0x18] sm:$0xf]
  %v1307 = vld [vmem:[%s8 + $0x1c] sm:$0xf]
  %v1308 = vld [vmem:[%s8 + $0x20] sm:$0xf]
  %v1309 = vld [vmem:[%s8 + $0x24] sm:$0xf]
  %v1310 = vld [vmem:[%s8 + $0x28] sm:$0xf]
  %v1311 = vld [vmem:[%s8 + $0x2c] sm:$0xf]
  %v1312 = vld [vmem:[%s8 + $0x30] sm:$0xf]
  %v1313 = vld [vmem:[%s8 + $0x34] sm:$0xf]
  %v1314 = vld [vmem:[%s8 + $0x38] sm:$0xf]
  %v1315 = vld [vmem:[%s8 + $0x3c] sm:$0xf]
  %v1316 = vld [vmem:[%s9] sm:$0x1]
  %v1318 = vlaneseq
  %v1319 = vshrl.u32 %v1318, 7
  %v1320 = vsub.s32 0, %v1319
  %v1321 = vrot.slane %v1316, %v1320
  %v1339 = vunpack.c.l.b16 %v1300
  %v1340 = vunpack.c.l.b16 %v1301
  %v1341 = vunpack.c.l.b16 %v1302
  %v1342 = vunpack.c.l.b16 %v1303
  %v1343 = vunpack.c.l.b16 %v1304
  %v1344 = vunpack.c.l.b16 %v1305
  %v1345 = vunpack.c.l.b16 %v1306
  %v1346 = vunpack.c.l.b16 %v1307
  %v1347 = vunpack.c.l.b16 %v1308
  %v1348 = vunpack.c.l.b16 %v1309
  %v1349 = vunpack.c.l.b16 %v1310
  %v1350 = vunpack.c.l.b16 %v1311
  %v1351 = vunpack.c.l.b16 %v1312
  %v1352 = vunpack.c.l.b16 %v1313
  %v1353 = vunpack.c.l.b16 %v1314
  %v1354 = vunpack.c.l.b16 %v1315
  %v1355 = vpack.c.b16 %v1340, %v1339
  %v1356 = vpack.c.b16 %v1342, %v1341
  %v1357 = vpack.c.b16 %v1344, %v1343
  %v1358 = vpack.c.b16 %v1346, %v1345
  %v1359 = vpack.c.b16 %v1348, %v1347
  %v1360 = vpack.c.b16 %v1350, %v1349
  %v1361 = vpack.c.b16 %v1352, %v1351
  %v1362 = vpack.c.b16 %v1354, %v1353
  %1371 = vmatprep.subr.bf16.mxu0 0
  %1372 = vmatpush1.bf16.msra.mxu0 %v1362
  %1373 = vmatprep.subr.bf16.mxu0 0
  %1374 = vmatpush1.bf16.msra.mxu0 %v1361
  %1375 = vmatprep.subr.bf16.mxu0 0
  %1376 = vmatpush1.bf16.msra.mxu0 %v1360
  %1377 = vmatprep.subr.bf16.mxu0 0
  %1378 = vmatpush1.bf16.msra.mxu0 %v1359
  %1379 = vmatprep.subr.bf16.mxu0 0
  %1380 = vmatpush1.bf16.msra.mxu0 %v1358
  %1381 = vmatprep.subr.bf16.mxu0 0
  %1382 = vmatpush1.bf16.msra.mxu0 %v1357
  %1383 = vmatprep.subr.bf16.mxu0 0
  %1384 = vmatpush1.bf16.msra.mxu0 %v1356
  %1385 = vmatprep.subr.bf16.mxu0 0
  %1386 = vmatpush1.bf16.msra.mxu0 %v1355
  %1387 = vmatprep.subr.bf16.mxu0 0
  %1388 = vmatpush2.bf16.msra.mxu0 0
  %1389 = vmatprep.subr.bf16.mxu0 0
  %1390 = vmatpush2.bf16.msra.mxu0 0
  %1391 = vmatprep.subr.bf16.mxu0 0
  %1392 = vmatpush2.bf16.msra.mxu0 0
  %1393 = vmatprep.subr.bf16.mxu0 0
  %1394 = vmatpush2.bf16.msra.mxu0 0
  %1395 = vmatprep.subr.bf16.mxu0 0
  %1396 = vmatpush2.bf16.msra.mxu0 0
  %1397 = vmatprep.subr.bf16.mxu0 0
  %1398 = vmatpush2.bf16.msra.mxu0 0
  %1399 = vmatprep.subr.bf16.mxu0 0
  %1400 = vmatpush2.bf16.msra.mxu0 0
  %1401 = vmatprep.subr.bf16.mxu0 0
  %1402 = vmatpush2.bf16.msra.mxu0 0
  %1403 = vmatprep.mubr.bf16.mxu0 0
  %1404 = vmatmul.mubr.bf16.gmra.mxu0 %v1299
  %v1405 = vpop.f32.mrf.mxu0
  %v1406 = vadd.f32 %v1321, %v1405
  %v1407 = vpop.f32.mrf.mxu0
  %v1408 = vpop.f32.mrf.mxu0
  %v1409 = vpop.f32.mrf.mxu0
  %1410 = vdwg.mxu0
  %1411 = vst [vmem:[%s10] sm:$0xff] %v1406
  // Predicated region
  $region42: #{rnn_forward.1} parent=0 // pred_check
    _
  $region43: #{rnn_forward.1} parent=0 // pred_check_branch
    %1413 = sbr.rel (0) target = $region45
  $region44: #{rnn_forward.1} parent=0 // pred_region
    _
  $region45: #{rnn_forward.1} parent=0 // pred_fallthru
    _
  // Predicated region
  $region46: #{rnn_forward.1} parent=0 // pred_check
    _
  $region47: #{rnn_forward.1} parent=0 // pred_check_branch
    %1415 = sbr.rel (0) target = $region49
  $region48: #{rnn_forward.1} parent=0 // pred_region
    _
  $region49: #{rnn_forward.1} parent=0 // pred_fallthru
    _

</llo_original>
